<compile_context>
chip_gen: v5e
topology: v5e:2x2
jax: 0.10.0
libtpu: 0.0.40
codegen_flags: <defaults>
</compile_context>

<pallas_src>
import functools
import math

import jax
import jax.numpy as jnp
from jax.experimental import pallas as pl
from jax.experimental.pallas import tpu as pltpu


_VMEM_LIMIT_BYTES = 48 * 1024 * 1024  # below v7x's 64 MiB physical, > v5e default


def _round_up(v, m):
    return ((v + m - 1) // m) * m


def _largest_tile(n, candidates=(512, 256, 128)):
    for c in candidates:
        if n % c == 0:
            return c
    return n


# ---------------------------------------------------------------------------
# Pallas kernels
# ---------------------------------------------------------------------------

def _gcn_pre_kernel(x_ref, ws_ref, wn_ref, b_ref, pre_ref, sup_ref):
    """Pass A: pre = x @ W_self + bias,  support = x @ W_neighbor (row tile)."""
    x = x_ref[...]
    pre_ref[...] = (
        jnp.dot(x, ws_ref[...], preferred_element_type=jnp.float32) + b_ref[...]
    ).astype(pre_ref.dtype)
    sup_ref[...] = jnp.dot(
        x, wn_ref[...], preferred_element_type=jnp.float32
    ).astype(sup_ref.dtype)


def _gcn_agg_kernel(adj_ref, sup_ref, pre_ref, o_ref, acc_ref, *, relu):
    """Pass B: out = [relu](adj @ support + pre), tiled over (rows, adj cols)."""
    @pl.when(pl.program_id(1) == 0)
    def _():
        acc_ref[...] = jnp.zeros_like(acc_ref)

    # adj is streamed as bf16 (exact for {0, 0.5, 1}); promote in-register so
    # the accumulation stays full f32.
    acc_ref[...] += jnp.dot(
        adj_ref[...].astype(jnp.float32), sup_ref[...],
        preferred_element_type=jnp.float32)

    @pl.when(pl.program_id(1) == pl.num_programs(1) - 1)
    def _():
        out = acc_ref[...] + pre_ref[...]
        if relu:
            out = jnp.maximum(out, 0.0)
        o_ref[...] = out.astype(o_ref.dtype)


def _decoder_kernel(zx_ref, zy_ref, w1x_ref, w1y_ref, b1_ref, w2_ref, b2_ref,
                    o_ref):
    """sigmoid(fc2(relu(fc1(cat(zx, zy)))))  with fc1 split into x/y halves."""
    h = (jnp.dot(zx_ref[...], w1x_ref[...], preferred_element_type=jnp.float32)
         + jnp.dot(zy_ref[...], w1y_ref[...], preferred_element_type=jnp.float32)
         + b1_ref[...])
    h = jnp.maximum(h, 0.0)
    logits = jnp.dot(h, w2_ref[...], preferred_element_type=jnp.float32) + b2_ref[...]
    o_ref[...] = jax.nn.sigmoid(logits).astype(o_ref.dtype)


# ---------------------------------------------------------------------------
# Layer wrappers
# ---------------------------------------------------------------------------

def gcn_layer(x_pad, adj_bf16, w_self, w_neigh, bias, *, relu):
    """One GraphConvolutionFirstOrder layer on padded operands."""
    n_pad, fin_pad = x_pad.shape
    fout_pad = w_self.shape[1]
    tm = _largest_tile(n_pad)
    tk = _largest_tile(n_pad)

    # ---- Pass A: per-row-tile dense projections (support is NOT recomputed
    # per output-row tile in pass B). ----
    pre, support = pl.pallas_call(
        _gcn_pre_kernel,
        out_shape=(jax.ShapeDtypeStruct((n_pad, fout_pad), jnp.float32),
                   jax.ShapeDtypeStruct((n_pad, fout_pad), jnp.float32)),
        grid_spec=pltpu.PrefetchScalarGridSpec(
            num_scalar_prefetch=0,
            grid=(n_pad // tm,),
            in_specs=[
                pl.BlockSpec((tm, fin_pad), lambda i: (i, 0)),
                pl.BlockSpec((fin_pad, fout_pad), lambda i: (0, 0)),
                pl.BlockSpec((fin_pad, fout_pad), lambda i: (0, 0)),
                pl.BlockSpec((1, fout_pad), lambda i: (0, 0)),
            ],
            out_specs=[
                pl.BlockSpec((tm, fout_pad), lambda i: (i, 0)),
                pl.BlockSpec((tm, fout_pad), lambda i: (i, 0)),
            ]),
        compiler_params=pltpu.CompilerParams(
            dimension_semantics=("parallel",),
            vmem_limit_bytes=_VMEM_LIMIT_BYTES),
    )(x_pad, w_self, w_neigh, bias)

    # ---- Pass B: tiled adjacency aggregation with VMEM accumulator. ----
    out = pl.pallas_call(
        functools.partial(_gcn_agg_kernel, relu=relu),
        out_shape=jax.ShapeDtypeStruct((n_pad, fout_pad), jnp.float32),
        grid_spec=pltpu.PrefetchScalarGridSpec(
            num_scalar_prefetch=0,
            grid=(n_pad // tm, n_pad // tk),
            in_specs=[
                pl.BlockSpec((tm, tk), lambda i, k: (i, k)),        # adj (bf16)
                pl.BlockSpec((tk, fout_pad), lambda i, k: (k, 0)),  # support
                pl.BlockSpec((tm, fout_pad), lambda i, k: (i, 0)),  # pre
            ],
            out_specs=pl.BlockSpec((tm, fout_pad), lambda i, k: (i, 0)),
            scratch_shapes=[pltpu.VMEM((tm, fout_pad), jnp.float32)]),
        compiler_params=pltpu.CompilerParams(
            dimension_semantics=("parallel", "arbitrary"),
            vmem_limit_bytes=_VMEM_LIMIT_BYTES),
    )(adj_bf16, support, pre)
    return out


def mlp_decoder(z_pad, x_idx, y_idx, w1x, w1y, b1, w2, b2):
    """MLPDecoder on padded z; returns (E, 1)."""
    # Row gather stays in XLA; w1 is split so the (E, 2*nhid) concat is never
    # materialized.
    # TODO(synk): fully fusing the gather into the kernel needs scalar-prefetch
    # indices + per-row manual DMA; kept in XLA here.
    zx = z_pad[x_idx]
    zy = z_pad[y_idx]
    e = x_idx.shape[0]
    e_pad = _round_up(max(e, 8), 8)
    if e_pad != e:
        zx = jnp.pad(zx, ((0, e_pad - e), (0, 0)))
        zy = jnp.pad(zy, ((0, e_pad - e), (0, 0)))
    te = _largest_tile(e_pad, (512, 256, 128, 64, 32, 16, 8))
    h_pad = z_pad.shape[1]
    lanes = w2.shape[1]  # 128 (zero-padded fc2) -> lane-dense unmasked stores

    out = pl.pallas_call(
        _decoder_kernel,
        out_shape=jax.ShapeDtypeStruct((e_pad, lanes), jnp.float32),
        grid_spec=pltpu.PrefetchScalarGridSpec(
            num_scalar_prefetch=0,
            grid=(e_pad // te,),
            in_specs=[
                pl.BlockSpec((te, h_pad), lambda i: (i, 0)),
                pl.BlockSpec((te, h_pad), lambda i: (i, 0)),
                pl.BlockSpec((h_pad, h_pad), lambda i: (0, 0)),
                pl.BlockSpec((h_pad, h_pad), lambda i: (0, 0)),
                pl.BlockSpec((1, h_pad), lambda i: (0, 0)),
                pl.BlockSpec((h_pad, lanes), lambda i: (0, 0)),
                pl.BlockSpec((1, lanes), lambda i: (0, 0)),
            ],
            out_specs=pl.BlockSpec((te, lanes), lambda i: (i, 0))),
        compiler_params=pltpu.CompilerParams(
            dimension_semantics=("parallel",),
            vmem_limit_bytes=_VMEM_LIMIT_BYTES),
    )(zx, zy, w1x, w1y, b1, w2, b2)
    return out[:e, :1]


# ---------------------------------------------------------------------------
# Parameter init (mirrors the PyTorch __init__ shapes) and lane-padding
# ---------------------------------------------------------------------------

def _uniform(key, shape, bound):
    return jax.random.uniform(key, shape, jnp.float32, minval=-bound, maxval=bound)


def init_gae_params(key, nfeat, nhid):
    keys = jax.random.split(key, 16)
    params = {}
    stdv = 1.0 / math.sqrt(nhid)
    params["gc1"] = dict(
        w_self=_uniform(keys[0], (nfeat, nhid), stdv),
        w_neigh=_uniform(keys[1], (nfeat, nhid), stdv),
        bias=_uniform(keys[2], (nhid,), stdv),
    )
    params["gc2"] = dict(
        w_self=_uniform(keys[3], (nhid, nhid), stdv),
        w_neigh=_uniform(keys[4], (nhid, nhid), stdv),
        bias=_uniform(keys[5], (nhid,), stdv),
    )
    params["gc3"] = dict(
        w_self=_uniform(keys[6], (nhid, nhid), stdv),
        w_neigh=_uniform(keys[7], (nhid, nhid), stdv),
        bias=_uniform(keys[8], (nhid,), stdv),
    )
    b1 = 1.0 / math.sqrt(2 * nhid)
    b2 = 1.0 / math.sqrt(nhid)
    params["dec"] = dict(
        w1=_uniform(keys[9], (2 * nhid, nhid), b1),   # stored (in, out)
        b1=_uniform(keys[10], (nhid,), b1),
        w2=_uniform(keys[11], (nhid, 1), b2),
        b2=_uniform(keys[12], (1,), b2),
    )
    # NOTE: fc1..fc4, ln1, ln2 exist in GAE.__init__ but are unused in forward().
    return params


def _pad_gae_params(params, nfeat, nhid):
    """Zero-pad weights/biases to 128-lane multiples (exact: pads are zero)."""
    fin_pad = _round_up(nfeat, 128)
    h_pad = _round_up(nhid, 128)

    def pad_gcn(p, fin, fin_p):
        return dict(
            w_self=jnp.zeros((fin_p, h_pad), jnp.float32)
                   .at[:fin, :nhid].set(p["w_self"]),
            w_neigh=jnp.zeros((fin_p, h_pad), jnp.float32)
                    .at[:fin, :nhid].set(p["w_neigh"]),
            bias=jnp.zeros((1, h_pad), jnp.float32).at[0, :nhid].set(p["bias"]),
        )

    padded = {
        "gc1": pad_gcn(params["gc1"], nfeat, fin_pad),
        "gc2": pad_gcn(params["gc2"], nhid, h_pad),
        "gc3": pad_gcn(params["gc3"], nhid, h_pad),
    }
    w1, b1 = params["dec"]["w1"], params["dec"]["b1"]
    w2, b2 = params["dec"]["w2"], params["dec"]["b2"]
    padded["dec"] = dict(
        w1x=jnp.zeros((h_pad, h_pad), jnp.float32).at[:nhid, :nhid].set(w1[:nhid]),
        w1y=jnp.zeros((h_pad, h_pad), jnp.float32).at[:nhid, :nhid].set(w1[nhid:]),
        b1=jnp.zeros((1, h_pad), jnp.float32).at[0, :nhid].set(b1),
        # fc2 padded to 128 output lanes so the decoder output is lane-dense.
        w2=jnp.zeros((h_pad, 128), jnp.float32).at[:nhid, :1].set(w2),
        b2=jnp.zeros((1, 128), jnp.float32).at[0, :1].set(b2),
    )
    return padded


# ---------------------------------------------------------------------------
# GAE forward
# ---------------------------------------------------------------------------

def gae_forward(params, inputs, adj, x_idx, y_idx):
    n, nfeat = inputs.shape
    nhid = params["gc1"]["bias"].shape[0]
    fin_pad = _round_up(nfeat, 128)
    n_pad = _round_up(n, 128)

    pp = _pad_gae_params(params, nfeat, nhid)

    x_pad = jnp.zeros((n_pad, fin_pad), jnp.float32).at[:n, :nfeat].set(inputs)
    # adj values {0, 0.5, 1} are exact in bf16 -> lossless here; halves the HBM
    # traffic of the dominant adj @ support stream.  (Arbitrary-valued adj would
    # lose precision.)
    adj_pad = jnp.zeros((n_pad, n_pad), jnp.float32).at[:n, :n].set(adj)
    adj_bf16 = adj_pad.astype(jnp.bfloat16)

    # encode
    x1 = gcn_layer(x_pad, adj_bf16, **pp["gc1"], relu=True)
    # TODO(synk): dropout(training=True) is stochastic; identity == eval mode.
    x2 = gcn_layer(x1, adj_bf16, **pp["gc2"], relu=True)
    z_pad = gcn_layer(x2, adj_bf16, **pp["gc3"], relu=False)

    # decode
    dec = mlp_decoder(z_pad, x_idx, y_idx,
                      pp["dec"]["w1x"], pp["dec"]["w1y"], pp["dec"]["b1"],
                      pp["dec"]["w2"], pp["dec"]["b2"])
    z = z_pad[:n, :nhid]
    return dec, z


def gae_forward_ref(params, inputs, adj, x_idx, y_idx):
    """Pure-JAX reference for correctness checking."""
    def gcn(x, p, relu):
        out = x @ p["w_self"] + adj @ (x @ p["w_neigh"]) + p["bias"]
        return jnp.maximum(out, 0.0) if relu else out

    x = gcn(inputs, params["gc1"], True)
    x = gcn(x, params["gc2"], True)
    z = gcn(x, params["gc3"], False)
    h = jnp.concatenate([z[x_idx], z[y_idx]], axis=1)
    h = jnp.maximum(h @ params["dec"]["w1"] + params["dec"]["b1"], 0.0)
    dec = jax.nn.sigmoid(h @ params["dec"]["w2"] + params["dec"]["b2"])
    return dec, z


# ---------------------------------------------------------------------------
# Main
# ---------------------------------------------------------------------------

if __name__ == "__main__":
    key = jax.random.PRNGKey(0)
    k_param, k_x, k_adj = jax.random.split(key, 3)

    N = 8        # number of graph nodes
    NFEAT = 16   # input feature dim
    NHID = 32    # hidden dim
    E = 4        # number of node pairs to decode

    params = init_gae_params(k_param, NFEAT, NHID)

    inputs = jax.random.normal(k_x, (N, NFEAT), jnp.float32)
    a = (jax.random.uniform(k_adj, (N, N)) > 0.5).astype(jnp.float32)
    adj = (a + a.T) * 0.5
    x_idx = jnp.array([0, 1, 2, 3], dtype=jnp.int32)
    y_idx = jnp.array([4, 5, 6, 7], dtype=jnp.int32)

    fwd = jax.jit(gae_forward)
    dec, z = fwd(params, inputs, adj, x_idx, y_idx)
    dec = jax.block_until_ready(dec)
    z = jax.block_until_ready(z)

    dec_ref, z_ref = gae_forward_ref(params, inputs, adj, x_idx, y_idx)
    assert dec.shape == (E, 1) and z.shape == (N, NHID)
    assert jnp.allclose(dec, dec_ref, atol=1e-4, rtol=1e-4), (
        float(jnp.max(jnp.abs(dec - dec_ref))))
    assert jnp.allclose(z, z_ref, atol=1e-4, rtol=1e-4), (
        float(jnp.max(jnp.abs(z - z_ref))))

    print("KERNEL_OK")
</pallas_src>

<mosaic_0001>
module attributes {stable_mosaic.version = 11 : i64} {
  func.func @_gcn_agg_kernel(%arg0: i32, %arg1: i32, %arg2: memref<128x128xbf16, #tpu.memory_space<vmem>>, %arg3: memref<128x128xf32, #tpu.memory_space<vmem>>, %arg4: memref<128x128xf32, #tpu.memory_space<vmem>>, %arg5: memref<128x128xf32, #tpu.memory_space<vmem>>, %arg6: memref<128x128xf32, #tpu.memory_space<vmem>>) attributes {dimension_semantics = [#tpu.dimension_semantics<parallel>, #tpu.dimension_semantics<arbitrary>], iteration_bounds = array<i64: 1, 1>, scalar_prefetch = 0 : i64, scratch_operands = 1 : i64, tpu.core_type = #tpu.core_type<tc>, window_params = [{transform_indices = @transform_0, window_bounds = array<i64: 128, 128>}, {transform_indices = @transform_1, window_bounds = array<i64: 128, 128>}, {transform_indices = @transform_2, window_bounds = array<i64: 128, 128>}, {transform_indices = @transform_3, window_bounds = array<i64: 128, 128>}]} {
    %c0_i32 = arith.constant 0 : i32
    %0 = arith.cmpi eq, %arg1, %c0_i32 : i32
    %1 = arith.extui %0 : i1 to i32
    %c0_i32_0 = arith.constant 0 : i32
    %2 = arith.cmpi ne, %1, %c0_i32_0 : i32
    scf.if %2 {
      %cst_10 = arith.constant 0.000000e+00 : f32
      %13 = vector.broadcast %cst_10 : f32 to vector<128x128xf32>
      %c0_11 = arith.constant 0 : index
      %c0_12 = arith.constant 0 : index
      %14 = vector.load %arg6[%c0_11, %c0_12] : memref<128x128xf32, #tpu.memory_space<vmem>>, vector<128x128xf32>
      tpu.vector_store %arg6[%c0_11, %c0_12], %13 {strides = array<i32>} : memref<128x128xf32, #tpu.memory_space<vmem>>, vector<128x128xf32>,
    } else {
    }
    %c0 = arith.constant 0 : index
    %c0_1 = arith.constant 0 : index
    %3 = vector.load %arg6[%c0, %c0_1] : memref<128x128xf32, #tpu.memory_space<vmem>>, vector<128x128xf32>
    %c0_2 = arith.constant 0 : index
    %c0_3 = arith.constant 0 : index
    %4 = vector.load %arg2[%c0_2, %c0_3] : memref<128x128xbf16, #tpu.memory_space<vmem>>, vector<128x128xbf16>
    %5 = arith.extf %4 : vector<128x128xbf16> to vector<128x128xf32>
    %c0_4 = arith.constant 0 : index
    %c0_5 = arith.constant 0 : index
    %6 = vector.load %arg3[%c0_4, %c0_5] : memref<128x128xf32, #tpu.memory_space<vmem>>, vector<128x128xf32>
    %cst = arith.constant dense<0.000000e+00> : vector<128x128xf32>
    %7 = tpu.matmul %5, %6, %cst {dimension_numbers = #tpu.dot_dimension_numbers<[1], [0], [0], [1], [0, 0, 1, 1], [], []>} : vector<128x128xf32>, vector<128x128xf32>, vector<128x128xf32> -> vector<128x128xf32>
    %8 = arith.addf %3, %7 : vector<128x128xf32>
    %c0_6 = arith.constant 0 : index
    %c0_7 = arith.constant 0 : index
    %9 = vector.load %arg6[%c0_6, %c0_7] : memref<128x128xf32, #tpu.memory_space<vmem>>, vector<128x128xf32>
    tpu.vector_store %arg6[%c0_6, %c0_7], %8 {strides = array<i32>} : memref<128x128xf32, #tpu.memory_space<vmem>>, vector<128x128xf32>,
    %c0_i32_8 = arith.constant 0 : i32
    %10 = arith.cmpi eq, %arg1, %c0_i32_8 : i32
    %11 = arith.extui %10 : i1 to i32
    %c0_i32_9 = arith.constant 0 : i32
    %12 = arith.cmpi ne, %11, %c0_i32_9 : i32
    scf.if %12 {
      %c0_10 = arith.constant 0 : index
      %c0_11 = arith.constant 0 : index
      %13 = vector.load %arg6[%c0_10, %c0_11] : memref<128x128xf32, #tpu.memory_space<vmem>>, vector<128x128xf32>
      %c0_12 = arith.constant 0 : index
      %c0_13 = arith.constant 0 : index
      %14 = vector.load %arg4[%c0_12, %c0_13] : memref<128x128xf32, #tpu.memory_space<vmem>>, vector<128x128xf32>
      %15 = arith.addf %13, %14 : vector<128x128xf32>
      %cst_14 = arith.constant 0.000000e+00 : f32
      %16 = vector.broadcast %cst_14 : f32 to vector<128x128xf32>
      %17 = arith.maximumf %15, %16 : vector<128x128xf32>
      %c0_15 = arith.constant 0 : index
      %c0_16 = arith.constant 0 : index
      %18 = vector.load %arg5[%c0_15, %c0_16] : memref<128x128xf32, #tpu.memory_space<vmem>>, vector<128x128xf32>
      tpu.vector_store %arg5[%c0_15, %c0_16], %17 {strides = array<i32>} : memref<128x128xf32, #tpu.memory_space<vmem>>, vector<128x128xf32>,
    } else {
    }
    return
  }
  func.func @transform_0(%arg0: i32, %arg1: i32) -> (i32, i32) {
    %c0_i32 = arith.constant 0 : i32
    return %arg0, %arg1 : i32, i32
  }
  func.func @transform_1(%arg0: i32, %arg1: i32) -> (i32, i32) {
    %c0_i32 = arith.constant 0 : i32
    %c0_i32_0 = arith.constant 0 : i32
    return %arg1, %c0_i32 : i32, i32
  }
  func.func @transform_2(%arg0: i32, %arg1: i32) -> (i32, i32) {
    %c0_i32 = arith.constant 0 : i32
    %c0_i32_0 = arith.constant 0 : i32
    return %arg0, %c0_i32 : i32, i32
  }
  func.func @transform_3(%arg0: i32, %arg1: i32) -> (i32, i32) {
    %c0_i32 = arith.constant 0 : i32
    %c0_i32_0 = arith.constant 0 : i32
    return %arg0, %c0_i32 : i32, i32
  }
}

module attributes {stable_mosaic.version = 11 : i64} {
  func.func @_gcn_pre_kernel(%arg0: i32, %arg1: memref<128x128xf32, #tpu.memory_space<vmem>>, %arg2: memref<128x128xf32, #tpu.memory_space<vmem>>, %arg3: memref<128x128xf32, #tpu.memory_space<vmem>>, %arg4: memref<1x128xf32, #tpu.memory_space<vmem>>, %arg5: memref<128x128xf32, #tpu.memory_space<vmem>>, %arg6: memref<128x128xf32, #tpu.memory_space<vmem>>) attributes {dimension_semantics = [#tpu.dimension_semantics<parallel>], iteration_bounds = array<i64: 1>, scalar_prefetch = 0 : i64, scratch_operands = 0 : i64, tpu.core_type = #tpu.core_type<tc>, window_params = [{transform_indices = @transform_0, window_bounds = array<i64: 128, 128>}, {pipeline_mode = #tpu.pipeline_mode<synchronous>, transform_indices = @transform_1, window_bounds = array<i64: 128, 128>}, {pipeline_mode = #tpu.pipeline_mode<synchronous>, transform_indices = @transform_2, window_bounds = array<i64: 128, 128>}, {pipeline_mode = #tpu.pipeline_mode<synchronous>, transform_indices = @transform_3, window_bounds = array<i64: 1, 128>}, {transform_indices = @transform_4, window_bounds = array<i64: 128, 128>}, {transform_indices = @transform_5, window_bounds = array<i64: 128, 128>}]} {
    %c0 = arith.constant 0 : index
    %c0_0 = arith.constant 0 : index
    %0 = vector.load %arg1[%c0, %c0_0] : memref<128x128xf32, #tpu.memory_space<vmem>>, vector<128x128xf32>
    %c0_1 = arith.constant 0 : index
    %c0_2 = arith.constant 0 : index
    %1 = vector.load %arg2[%c0_1, %c0_2] : memref<128x128xf32, #tpu.memory_space<vmem>>, vector<128x128xf32>
    %cst = arith.constant dense<0.000000e+00> : vector<128x128xf32>
    %2 = tpu.matmul %0, %1, %cst {dimension_numbers = #tpu.dot_dimension_numbers<[1], [0], [0], [1], [0, 0, 1, 1], [], []>} : vector<128x128xf32>, vector<128x128xf32>, vector<128x128xf32> -> vector<128x128xf32>
    %c0_3 = arith.constant 0 : index
    %c0_4 = arith.constant 0 : index
    %3 = vector.load %arg4[%c0_3, %c0_4] : memref<1x128xf32, #tpu.memory_space<vmem>>, vector<1x128xf32>
    %4 = vector.broadcast %3 : vector<1x128xf32> to vector<128x128xf32>
    %5 = arith.addf %2, %4 : vector<128x128xf32>
    %c0_5 = arith.constant 0 : index
    %c0_6 = arith.constant 0 : index
    %6 = vector.load %arg5[%c0_5, %c0_6] : memref<128x128xf32, #tpu.memory_space<vmem>>, vector<128x128xf32>
    tpu.vector_store %arg5[%c0_5, %c0_6], %5 {strides = array<i32>} : memref<128x128xf32, #tpu.memory_space<vmem>>, vector<128x128xf32>,
    %c0_7 = arith.constant 0 : index
    %c0_8 = arith.constant 0 : index
    %7 = vector.load %arg3[%c0_7, %c0_8] : memref<128x128xf32, #tpu.memory_space<vmem>>, vector<128x128xf32>
    %cst_9 = arith.constant dense<0.000000e+00> : vector<128x128xf32>
    %8 = tpu.matmul %0, %7, %cst_9 {dimension_numbers = #tpu.dot_dimension_numbers<[1], [0], [0], [1], [0, 0, 1, 1], [], []>} : vector<128x128xf32>, vector<128x128xf32>, vector<128x128xf32> -> vector<128x128xf32>
    %c0_10 = arith.constant 0 : index
    %c0_11 = arith.constant 0 : index
    %9 = vector.load %arg6[%c0_10, %c0_11] : memref<128x128xf32, #tpu.memory_space<vmem>>, vector<128x128xf32>
    tpu.vector_store %arg6[%c0_10, %c0_11], %8 {strides = array<i32>} : memref<128x128xf32, #tpu.memory_space<vmem>>, vector<128x128xf32>,
    return
  }
  func.func @transform_0(%arg0: i32) -> (i32, i32) {
    %c0_i32 = arith.constant 0 : i32
    %c0_i32_0 = arith.constant 0 : i32
    return %arg0, %c0_i32 : i32, i32
  }
  func.func @transform_1(%arg0: i32) -> (i32, i32) {
    %c0_i32 = arith.constant 0 : i32
    %c0_i32_0 = arith.constant 0 : i32
    %c0_i32_1 = arith.constant 0 : i32
    return %c0_i32, %c0_i32_0 : i32, i32
  }
  func.func @transform_2(%arg0: i32) -> (i32, i32) {
    %c0_i32 = arith.constant 0 : i32
    %c0_i32_0 = arith.constant 0 : i32
    %c0_i32_1 = arith.constant 0 : i32
    return %c0_i32, %c0_i32_0 : i32, i32
  }
  func.func @transform_3(%arg0: i32) -> (i32, i32) {
    %c0_i32 = arith.constant 0 : i32
    %c0_i32_0 = arith.constant 0 : i32
    %c0_i32_1 = arith.constant 0 : i32
    return %c0_i32, %c0_i32_0 : i32, i32
  }
  func.func @transform_4(%arg0: i32) -> (i32, i32) {
    %c0_i32 = arith.constant 0 : i32
    %c0_i32_0 = arith.constant 0 : i32
    return %arg0, %c0_i32 : i32, i32
  }
  func.func @transform_5(%arg0: i32) -> (i32, i32) {
    %c0_i32 = arith.constant 0 : i32
    %c0_i32_0 = arith.constant 0 : i32
    return %arg0, %c0_i32 : i32, i32
  }
}

module attributes {stable_mosaic.version = 11 : i64} {
  func.func @_gcn_agg_kernel(%arg0: i32, %arg1: i32, %arg2: memref<128x128xbf16, #tpu.memory_space<vmem>>, %arg3: memref<128x128xf32, #tpu.memory_space<vmem>>, %arg4: memref<128x128xf32, #tpu.memory_space<vmem>>, %arg5: memref<128x128xf32, #tpu.memory_space<vmem>>, %arg6: memref<128x128xf32, #tpu.memory_space<vmem>>) attributes {dimension_semantics = [#tpu.dimension_semantics<parallel>, #tpu.dimension_semantics<arbitrary>], iteration_bounds = array<i64: 1, 1>, scalar_prefetch = 0 : i64, scratch_operands = 1 : i64, tpu.core_type = #tpu.core_type<tc>, window_params = [{transform_indices = @transform_0, window_bounds = array<i64: 128, 128>}, {transform_indices = @transform_1, window_bounds = array<i64: 128, 128>}, {transform_indices = @transform_2, window_bounds = array<i64: 128, 128>}, {transform_indices = @transform_3, window_bounds = array<i64: 128, 128>}]} {
    %c0_i32 = arith.constant 0 : i32
    %0 = arith.cmpi eq, %arg1, %c0_i32 : i32
    %1 = arith.extui %0 : i1 to i32
    %c0_i32_0 = arith.constant 0 : i32
    %2 = arith.cmpi ne, %1, %c0_i32_0 : i32
    scf.if %2 {
      %cst_10 = arith.constant 0.000000e+00 : f32
      %13 = vector.broadcast %cst_10 : f32 to vector<128x128xf32>
      %c0_11 = arith.constant 0 : index
      %c0_12 = arith.constant 0 : index
      %14 = vector.load %arg6[%c0_11, %c0_12] : memref<128x128xf32, #tpu.memory_space<vmem>>, vector<128x128xf32>
      tpu.vector_store %arg6[%c0_11, %c0_12], %13 {strides = array<i32>} : memref<128x128xf32, #tpu.memory_space<vmem>>, vector<128x128xf32>,
    } else {
    }
    %c0 = arith.constant 0 : index
    %c0_1 = arith.constant 0 : index
    %3 = vector.load %arg6[%c0, %c0_1] : memref<128x128xf32, #tpu.memory_space<vmem>>, vector<128x128xf32>
    %c0_2 = arith.constant 0 : index
    %c0_3 = arith.constant 0 : index
    %4 = vector.load %arg2[%c0_2, %c0_3] : memref<128x128xbf16, #tpu.memory_space<vmem>>, vector<128x128xbf16>
    %5 = arith.extf %4 : vector<128x128xbf16> to vector<128x128xf32>
    %c0_4 = arith.constant 0 : index
    %c0_5 = arith.constant 0 : index
    %6 = vector.load %arg3[%c0_4, %c0_5] : memref<128x128xf32, #tpu.memory_space<vmem>>, vector<128x128xf32>
    %cst = arith.constant dense<0.000000e+00> : vector<128x128xf32>
    %7 = tpu.matmul %5, %6, %cst {dimension_numbers = #tpu.dot_dimension_numbers<[1], [0], [0], [1], [0, 0, 1, 1], [], []>} : vector<128x128xf32>, vector<128x128xf32>, vector<128x128xf32> -> vector<128x128xf32>
    %8 = arith.addf %3, %7 : vector<128x128xf32>
    %c0_6 = arith.constant 0 : index
    %c0_7 = arith.constant 0 : index
    %9 = vector.load %arg6[%c0_6, %c0_7] : memref<128x128xf32, #tpu.memory_space<vmem>>, vector<128x128xf32>
    tpu.vector_store %arg6[%c0_6, %c0_7], %8 {strides = array<i32>} : memref<128x128xf32, #tpu.memory_space<vmem>>, vector<128x128xf32>,
    %c0_i32_8 = arith.constant 0 : i32
    %10 = arith.cmpi eq, %arg1, %c0_i32_8 : i32
    %11 = arith.extui %10 : i1 to i32
    %c0_i32_9 = arith.constant 0 : i32
    %12 = arith.cmpi ne, %11, %c0_i32_9 : i32
    scf.if %12 {
      %c0_10 = arith.constant 0 : index
      %c0_11 = arith.constant 0 : index
      %13 = vector.load %arg6[%c0_10, %c0_11] : memref<128x128xf32, #tpu.memory_space<vmem>>, vector<128x128xf32>
      %c0_12 = arith.constant 0 : index
      %c0_13 = arith.constant 0 : index
      %14 = vector.load %arg4[%c0_12, %c0_13] : memref<128x128xf32, #tpu.memory_space<vmem>>, vector<128x128xf32>
      %15 = arith.addf %13, %14 : vector<128x128xf32>
      %c0_14 = arith.constant 0 : index
      %c0_15 = arith.constant 0 : index
      %16 = vector.load %arg5[%c0_14, %c0_15] : memref<128x128xf32, #tpu.memory_space<vmem>>, vector<128x128xf32>
      tpu.vector_store %arg5[%c0_14, %c0_15], %15 {strides = array<i32>} : memref<128x128xf32, #tpu.memory_space<vmem>>, vector<128x128xf32>,
    } else {
    }
    return
  }
  func.func @transform_0(%arg0: i32, %arg1: i32) -> (i32, i32) {
    %c0_i32 = arith.constant 0 : i32
    return %arg0, %arg1 : i32, i32
  }
  func.func @transform_1(%arg0: i32, %arg1: i32) -> (i32, i32) {
    %c0_i32 = arith.constant 0 : i32
    %c0_i32_0 = arith.constant 0 : i32
    return %arg1, %c0_i32 : i32, i32
  }
  func.func @transform_2(%arg0: i32, %arg1: i32) -> (i32, i32) {
    %c0_i32 = arith.constant 0 : i32
    %c0_i32_0 = arith.constant 0 : i32
    return %arg0, %c0_i32 : i32, i32
  }
  func.func @transform_3(%arg0: i32, %arg1: i32) -> (i32, i32) {
    %c0_i32 = arith.constant 0 : i32
    %c0_i32_0 = arith.constant 0 : i32
    return %arg0, %c0_i32 : i32, i32
  }
}

module attributes {stable_mosaic.version = 11 : i64} {
  func.func @_decoder_kernel(%arg0: i32, %arg1: memref<8x128xf32, #tpu.memory_space<vmem>>, %arg2: memref<8x128xf32, #tpu.memory_space<vmem>>, %arg3: memref<128x128xf32, #tpu.memory_space<vmem>>, %arg4: memref<128x128xf32, #tpu.memory_space<vmem>>, %arg5: memref<1x128xf32, #tpu.memory_space<vmem>>, %arg6: memref<128x128xf32, #tpu.memory_space<vmem>>, %arg7: memref<1x128xf32, #tpu.memory_space<vmem>>, %arg8: memref<8x128xf32, #tpu.memory_space<vmem>>) attributes {dimension_semantics = [#tpu.dimension_semantics<parallel>], iteration_bounds = array<i64: 1>, scalar_prefetch = 0 : i64, scratch_operands = 0 : i64, tpu.core_type = #tpu.core_type<tc>, window_params = [{transform_indices = @transform_0, window_bounds = array<i64: 8, 128>}, {transform_indices = @transform_1, window_bounds = array<i64: 8, 128>}, {pipeline_mode = #tpu.pipeline_mode<synchronous>, transform_indices = @transform_2, window_bounds = array<i64: 128, 128>}, {pipeline_mode = #tpu.pipeline_mode<synchronous>, transform_indices = @transform_3, window_bounds = array<i64: 128, 128>}, {pipeline_mode = #tpu.pipeline_mode<synchronous>, transform_indices = @transform_4, window_bounds = array<i64: 1, 128>}, {pipeline_mode = #tpu.pipeline_mode<synchronous>, transform_indices = @transform_5, window_bounds = array<i64: 128, 128>}, {pipeline_mode = #tpu.pipeline_mode<synchronous>, transform_indices = @transform_6, window_bounds = array<i64: 1, 128>}, {transform_indices = @transform_7, window_bounds = array<i64: 8, 128>}]} {
    %c0 = arith.constant 0 : index
    %c0_0 = arith.constant 0 : index
    %0 = vector.load %arg1[%c0, %c0_0] : memref<8x128xf32, #tpu.memory_space<vmem>>, vector<8x128xf32>
    %c0_1 = arith.constant 0 : index
    %c0_2 = arith.constant 0 : index
    %1 = vector.load %arg3[%c0_1, %c0_2] : memref<128x128xf32, #tpu.memory_space<vmem>>, vector<128x128xf32>
    %cst = arith.constant dense<0.000000e+00> : vector<8x128xf32>
    %2 = tpu.matmul %0, %1, %cst {dimension_numbers = #tpu.dot_dimension_numbers<[1], [0], [0], [1], [0, 0, 1, 1], [], []>} : vector<8x128xf32>, vector<128x128xf32>, vector<8x128xf32> -> vector<8x128xf32>
    %c0_3 = arith.constant 0 : index
    %c0_4 = arith.constant 0 : index
    %3 = vector.load %arg2[%c0_3, %c0_4] : memref<8x128xf32, #tpu.memory_space<vmem>>, vector<8x128xf32>
    %c0_5 = arith.constant 0 : index
    %c0_6 = arith.constant 0 : index
    %4 = vector.load %arg4[%c0_5, %c0_6] : memref<128x128xf32, #tpu.memory_space<vmem>>, vector<128x128xf32>
    %cst_7 = arith.constant dense<0.000000e+00> : vector<8x128xf32>
    %5 = tpu.matmul %3, %4, %cst_7 {dimension_numbers = #tpu.dot_dimension_numbers<[1], [0], [0], [1], [0, 0, 1, 1], [], []>} : vector<8x128xf32>, vector<128x128xf32>, vector<8x128xf32> -> vector<8x128xf32>
    %6 = arith.addf %2, %5 : vector<8x128xf32>
    %c0_8 = arith.constant 0 : index
    %c0_9 = arith.constant 0 : index
    %7 = vector.load %arg5[%c0_8, %c0_9] : memref<1x128xf32, #tpu.memory_space<vmem>>, vector<1x128xf32>
    %8 = vector.broadcast %7 : vector<1x128xf32> to vector<8x128xf32>
    %9 = arith.addf %6, %8 : vector<8x128xf32>
    %cst_10 = arith.constant 0.000000e+00 : f32
    %10 = vector.broadcast %cst_10 : f32 to vector<8x128xf32>
    %11 = arith.maximumf %9, %10 : vector<8x128xf32>
    %c0_11 = arith.constant 0 : index
    %c0_12 = arith.constant 0 : index
    %12 = vector.load %arg6[%c0_11, %c0_12] : memref<128x128xf32, #tpu.memory_space<vmem>>, vector<128x128xf32>
    %cst_13 = arith.constant dense<0.000000e+00> : vector<8x128xf32>
    %13 = tpu.matmul %11, %12, %cst_13 {dimension_numbers = #tpu.dot_dimension_numbers<[1], [0], [0], [1], [0, 0, 1, 1], [], []>} : vector<8x128xf32>, vector<128x128xf32>, vector<8x128xf32> -> vector<8x128xf32>
    %c0_14 = arith.constant 0 : index
    %c0_15 = arith.constant 0 : index
    %14 = vector.load %arg7[%c0_14, %c0_15] : memref<1x128xf32, #tpu.memory_space<vmem>>, vector<1x128xf32>
    %15 = vector.broadcast %14 : vector<1x128xf32> to vector<8x128xf32>
    %16 = arith.addf %13, %15 : vector<8x128xf32>
    %17 = arith.negf %16 : vector<8x128xf32>
    %18 = math.exp %17 : vector<8x128xf32>
    %cst_16 = arith.constant 1.000000e+00 : f32
    %19 = vector.broadcast %cst_16 : f32 to vector<8x128xf32>
    %20 = arith.addf %19, %18 : vector<8x128xf32>
    %21 = arith.divf %19, %20 : vector<8x128xf32>
    %c0_17 = arith.constant 0 : index
    %c0_18 = arith.constant 0 : index
    %22 = vector.load %arg8[%c0_17, %c0_18] : memref<8x128xf32, #tpu.memory_space<vmem>>, vector<8x128xf32>
    tpu.vector_store %arg8[%c0_17, %c0_18], %21 {strides = array<i32>} : memref<8x128xf32, #tpu.memory_space<vmem>>, vector<8x128xf32>,
    return
  }
  func.func @transform_0(%arg0: i32) -> (i32, i32) {
    %c0_i32 = arith.constant 0 : i32
    %c0_i32_0 = arith.constant 0 : i32
    return %arg0, %c0_i32 : i32, i32
  }
  func.func @transform_1(%arg0: i32) -> (i32, i32) {
    %c0_i32 = arith.constant 0 : i32
    %c0_i32_0 = arith.constant 0 : i32
    return %arg0, %c0_i32 : i32, i32
  }
  func.func @transform_2(%arg0: i32) -> (i32, i32) {
    %c0_i32 = arith.constant 0 : i32
    %c0_i32_0 = arith.constant 0 : i32
    %c0_i32_1 = arith.constant 0 : i32
    return %c0_i32, %c0_i32_0 : i32, i32
  }
  func.func @transform_3(%arg0: i32) -> (i32, i32) {
    %c0_i32 = arith.constant 0 : i32
    %c0_i32_0 = arith.constant 0 : i32
    %c0_i32_1 = arith.constant 0 : i32
    return %c0_i32, %c0_i32_0 : i32, i32
  }
  func.func @transform_4(%arg0: i32) -> (i32, i32) {
    %c0_i32 = arith.constant 0 : i32
    %c0_i32_0 = arith.constant 0 : i32
    %c0_i32_1 = arith.constant 0 : i32
    return %c0_i32, %c0_i32_0 : i32, i32
  }
  func.func @transform_5(%arg0: i32) -> (i32, i32) {
    %c0_i32 = arith.constant 0 : i32
    %c0_i32_0 = arith.constant 0 : i32
    %c0_i32_1 = arith.constant 0 : i32
    return %c0_i32, %c0_i32_0 : i32, i32
  }
  func.func @transform_6(%arg0: i32) -> (i32, i32) {
    %c0_i32 = arith.constant 0 : i32
    %c0_i32_0 = arith.constant 0 : i32
    %c0_i32_1 = arith.constant 0 : i32
    return %c0_i32, %c0_i32_0 : i32, i32
  }
  func.func @transform_7(%arg0: i32) -> (i32, i32) {
    %c0_i32 = arith.constant 0 : i32
    %c0_i32_0 = arith.constant 0 : i32
    return %arg0, %c0_i32 : i32, i32
  }
}

</mosaic_0001>

<llo_original>
// kernel: gae_forward.12
$region0: #{gae_forward.12}
  #allocation0 [shape = 'u32[]', space=smem, size = 0x4, offset = 0x4, fixed_abs, tag = 'smem constant byte address 0x4 - core index']
  #allocation1 [shape = 'u32[72,128]{1,0:T(1,128)}', space=vmem, size = 0x9000, scoped, tag = 'internal scratch']
  #allocation2 [shape = 'f32[128,128]{1,0:T(8,128)}', space=vmem, size = 0x10000, scoped, tag = 'scratch operand']
  %s0 = inlined_call_operand.vmem [shape: bf16[128,128], index: 0, kind: input, shape index: {}]
  %s1 = inlined_call_operand.vmem [shape: f32[128,128], index: 1, kind: input, shape index: {}]
  %s2 = inlined_call_operand.vmem [shape: f32[128,128], index: 2, kind: input, shape index: {}]
  %s3 = inlined_call_operand.vmem [shape: f32[128,128], index: 3, kind: output, shape index: {}]
  %s4 = sld [smem:[#allocation0]]
  $region30: #{gae_forward.12} parent=0
    _
  %s6 = ssub.s32 1, %s4
  %s7 = scalar_select 0, %s6, %s4
  // Predicated region
  $region2: #{gae_forward.12} parent=0 // pred_check
    _
  $region3: #{gae_forward.12} parent=0 // pred_check_branch
    %9 = sbr.rel (0) target = $region5
  $region4: #{gae_forward.12} parent=0 // pred_region
    _
  $region5: #{gae_forward.12} parent=0 // pred_fallthru
    _
  // Predicated region
  $region6: #{gae_forward.12} parent=0 // pred_check
    _
  $region7: #{gae_forward.12} parent=0 // pred_check_branch
    %11 = sbr.rel (0) target = $region9
  $region8: #{gae_forward.12} parent=0 // pred_region
    _
  $region9: #{gae_forward.12} parent=0 // pred_fallthru
    _
  // Predicated region
  $region10: #{gae_forward.12} parent=0 // pred_check
    _
  $region11: #{gae_forward.12} parent=0 // pred_check_branch
    %13 = sbr.rel (0) target = $region13
  $region12: #{gae_forward.12} parent=0 // pred_region
    _
  $region13: #{gae_forward.12} parent=0 // pred_fallthru
    _
  %p14 = scmp.eq.s32.totalorder 0, 0
  // Predicated region
  $region14: #{gae_forward.12} parent=0 // pred_check
    %p15 = pneg %p14
  $region15: #{gae_forward.12} parent=0 // pred_check_branch
    %17 = sbr.rel (%p15) target = $region17
  $region16: #{gae_forward.12} parent=0 // pred_region
    %18 = vst [vmem:[#allocation2] sm:$0xff] 0.0
    %19 = vst [vmem:[#allocation2 + $0x8] sm:$0xff] 0.0
    %20 = vst [vmem:[#allocation2 + $0x10] sm:$0xff] 0.0
    %21 = vst [vmem:[#allocation2 + $0x18] sm:$0xff] 0.0
    %22 = vst [vmem:[#allocation2 + $0x20] sm:$0xff] 0.0
    %23 = vst [vmem:[#allocation2 + $0x28] sm:$0xff] 0.0
    %24 = vst [vmem:[#allocation2 + $0x30] sm:$0xff] 0.0
    %25 = vst [vmem:[#allocation2 + $0x38] sm:$0xff] 0.0
    %26 = vst [vmem:[#allocation2 + $0x40] sm:$0xff] 0.0
    %27 = vst [vmem:[#allocation2 + $0x48] sm:$0xff] 0.0
    %28 = vst [vmem:[#allocation2 + $0x50] sm:$0xff] 0.0
    %29 = vst [vmem:[#allocation2 + $0x58] sm:$0xff] 0.0
    %30 = vst [vmem:[#allocation2 + $0x60] sm:$0xff] 0.0
    %31 = vst [vmem:[#allocation2 + $0x68] sm:$0xff] 0.0
    %32 = vst [vmem:[#allocation2 + $0x70] sm:$0xff] 0.0
    %33 = vst [vmem:[#allocation2 + $0x78] sm:$0xff] 0.0
  $region17: #{gae_forward.12} parent=0 // pred_fallthru
    _
  %v34 = vld [vmem:[#allocation2] sm:$0xff]
  %v35 = vld [vmem:[#allocation2 + $0x8] sm:$0xff]
  %v36 = vld [vmem:[#allocation2 + $0x10] sm:$0xff]
  %v37 = vld [vmem:[#allocation2 + $0x18] sm:$0xff]
  %v38 = vld [vmem:[#allocation2 + $0x20] sm:$0xff]
  %v39 = vld [vmem:[#allocation2 + $0x28] sm:$0xff]
  %v40 = vld [vmem:[#allocation2 + $0x30] sm:$0xff]
  %v41 = vld [vmem:[#allocation2 + $0x38] sm:$0xff]
  %v42 = vld [vmem:[#allocation2 + $0x40] sm:$0xff]
  %v43 = vld [vmem:[#allocation2 + $0x48] sm:$0xff]
  %v44 = vld [vmem:[#allocation2 + $0x50] sm:$0xff]
  %v45 = vld [vmem:[#allocation2 + $0x58] sm:$0xff]
  %v46 = vld [vmem:[#allocation2 + $0x60] sm:$0xff]
  %v47 = vld [vmem:[#allocation2 + $0x68] sm:$0xff]
  %v48 = vld [vmem:[#allocation2 + $0x70] sm:$0xff]
  %v49 = vld [vmem:[#allocation2 + $0x78] sm:$0xff]
  %v50 = vld [vmem:[%s0] sm:$0xf]
  %v51 = vld [vmem:[%s0 + $0x4] sm:$0xf]
  %v52 = vld [vmem:[%s0 + $0x8] sm:$0xf]
  %v53 = vld [vmem:[%s0 + $0xc] sm:$0xf]
  %v54 = vld [vmem:[%s0 + $0x10] sm:$0xf]
  %v55 = vld [vmem:[%s0 + $0x14] sm:$0xf]
  %v56 = vld [vmem:[%s0 + $0x18] sm:$0xf]
  %v57 = vld [vmem:[%s0 + $0x1c] sm:$0xf]
  %v58 = vld [vmem:[%s0 + $0x20] sm:$0xf]
  %v59 = vld [vmem:[%s0 + $0x24] sm:$0xf]
  %v60 = vld [vmem:[%s0 + $0x28] sm:$0xf]
  %v61 = vld [vmem:[%s0 + $0x2c] sm:$0xf]
  %v62 = vld [vmem:[%s0 + $0x30] sm:$0xf]
  %v63 = vld [vmem:[%s0 + $0x34] sm:$0xf]
  %v64 = vld [vmem:[%s0 + $0x38] sm:$0xf]
  %v65 = vld [vmem:[%s0 + $0x3c] sm:$0xf]
  %v66 = vunpack.c.l.bf16 %v50
  %v67 = vunpack.c.l.bf16 %v51
  %v68 = vunpack.c.l.bf16 %v52
  %v69 = vunpack.c.l.bf16 %v53
  %v70 = vunpack.c.l.bf16 %v54
  %v71 = vunpack.c.l.bf16 %v55
  %v72 = vunpack.c.l.bf16 %v56
  %v73 = vunpack.c.l.bf16 %v57
  %v74 = vunpack.c.l.bf16 %v58
  %v75 = vunpack.c.l.bf16 %v59
  %v76 = vunpack.c.l.bf16 %v60
  %v77 = vunpack.c.l.bf16 %v61
  %v78 = vunpack.c.l.bf16 %v62
  %v79 = vunpack.c.l.bf16 %v63
  %v80 = vunpack.c.l.bf16 %v64
  %v81 = vunpack.c.l.bf16 %v65
  %v82 = vld [vmem:[%s1] sm:$0xff]
  %v83 = vld [vmem:[%s1 + $0x8] sm:$0xff]
  %v84 = vld [vmem:[%s1 + $0x10] sm:$0xff]
  %v85 = vld [vmem:[%s1 + $0x18] sm:$0xff]
  %v86 = vld [vmem:[%s1 + $0x20] sm:$0xff]
  %v87 = vld [vmem:[%s1 + $0x28] sm:$0xff]
  %v88 = vld [vmem:[%s1 + $0x30] sm:$0xff]
  %v89 = vld [vmem:[%s1 + $0x38] sm:$0xff]
  %v90 = vld [vmem:[%s1 + $0x40] sm:$0xff]
  %v91 = vld [vmem:[%s1 + $0x48] sm:$0xff]
  %v92 = vld [vmem:[%s1 + $0x50] sm:$0xff]
  %v93 = vld [vmem:[%s1 + $0x58] sm:$0xff]
  %v94 = vld [vmem:[%s1 + $0x60] sm:$0xff]
  %v95 = vld [vmem:[%s1 + $0x68] sm:$0xff]
  %v96 = vld [vmem:[%s1 + $0x70] sm:$0xff]
  %v97 = vld [vmem:[%s1 + $0x78] sm:$0xff]
  %98 = vmatpush.msra.mxu0 %v97
  %99 = vmatpush.msra.mxu0 %v96
  %100 = vmatpush.msra.mxu0 %v95
  %101 = vmatpush.msra.mxu0 %v94
  %102 = vmatpush.msra.mxu0 %v93
  %103 = vmatpush.msra.mxu0 %v92
  %104 = vmatpush.msra.mxu0 %v91
  %105 = vmatpush.msra.mxu0 %v90
  %106 = vmatpush.msra.mxu0 %v89
  %107 = vmatpush.msra.mxu0 %v88
  %108 = vmatpush.msra.mxu0 %v87
  %109 = vmatpush.msra.mxu0 %v86
  %110 = vmatpush.msra.mxu0 %v85
  %111 = vmatpush.msra.mxu0 %v84
  %112 = vmatpush.msra.mxu0 %v83
  %113 = vmatpush.msra.mxu0 %v82
  %114 = vmatmul.f32.gmra.mxu0 %v66
  %v115 = vpop.f32.mrf.mxu0
  %v116 = vadd.f32 0.0, %v115
  %117 = vmatmul.f32.gmra.mxu0 %v67
  %v118 = vpop.f32.mrf.mxu0
  %v119 = vadd.f32 0.0, %v118
  %120 = vmatmul.f32.gmra.mxu0 %v68
  %v121 = vpop.f32.mrf.mxu0
  %v122 = vadd.f32 0.0, %v121
  %123 = vmatmul.f32.gmra.mxu0 %v69
  %v124 = vpop.f32.mrf.mxu0
  %v125 = vadd.f32 0.0, %v124
  %126 = vmatmul.f32.gmra.mxu0 %v70
  %v127 = vpop.f32.mrf.mxu0
  %v128 = vadd.f32 0.0, %v127
  %129 = vmatmul.f32.gmra.mxu0 %v71
  %v130 = vpop.f32.mrf.mxu0
  %v131 = vadd.f32 0.0, %v130
  %132 = vmatmul.f32.gmra.mxu0 %v72
  %v133 = vpop.f32.mrf.mxu0
  %v134 = vadd.f32 0.0, %v133
  %135 = vmatmul.f32.gmra.mxu0 %v73
  %v136 = vpop.f32.mrf.mxu0
  %v137 = vadd.f32 0.0, %v136
  %138 = vmatmul.f32.gmra.mxu0 %v74
  %v139 = vpop.f32.mrf.mxu0
  %v140 = vadd.f32 0.0, %v139
  %141 = vmatmul.f32.gmra.mxu0 %v75
  %v142 = vpop.f32.mrf.mxu0
  %v143 = vadd.f32 0.0, %v142
  %144 = vmatmul.f32.gmra.mxu0 %v76
  %v145 = vpop.f32.mrf.mxu0
  %v146 = vadd.f32 0.0, %v145
  %147 = vmatmul.f32.gmra.mxu0 %v77
  %v148 = vpop.f32.mrf.mxu0
  %v149 = vadd.f32 0.0, %v148
  %150 = vmatmul.f32.gmra.mxu0 %v78
  %v151 = vpop.f32.mrf.mxu0
  %v152 = vadd.f32 0.0, %v151
  %153 = vmatmul.f32.gmra.mxu0 %v79
  %v154 = vpop.f32.mrf.mxu0
  %v155 = vadd.f32 0.0, %v154
  %156 = vmatmul.f32.gmra.mxu0 %v80
  %v157 = vpop.f32.mrf.mxu0
  %v158 = vadd.f32 0.0, %v157
  %159 = vmatmul.f32.gmra.mxu0 %v81
  %v160 = vpop.f32.mrf.mxu0
  %v161 = vadd.f32 0.0, %v160
  %162 = vdwg.mxu0
  %v163 = vadd.f32 %v34, %v116
  %v164 = vadd.f32 %v35, %v119
  %v165 = vadd.f32 %v36, %v122
  %v166 = vadd.f32 %v37, %v125
  %v167 = vadd.f32 %v38, %v128
  %v168 = vadd.f32 %v39, %v131
  %v169 = vadd.f32 %v40, %v134
  %v170 = vadd.f32 %v41, %v137
  %v171 = vadd.f32 %v42, %v140
  %v172 = vadd.f32 %v43, %v143
  %v173 = vadd.f32 %v44, %v146
  %v174 = vadd.f32 %v45, %v149
  %v175 = vadd.f32 %v46, %v152
  %v176 = vadd.f32 %v47, %v155
  %v177 = vadd.f32 %v48, %v158
  %v178 = vadd.f32 %v49, %v161
  %179 = vst [vmem:[#allocation2] sm:$0xff] %v163
  %180 = vst [vmem:[#allocation2 + $0x8] sm:$0xff] %v164
  %181 = vst [vmem:[#allocation2 + $0x10] sm:$0xff] %v165
  %182 = vst [vmem:[#allocation2 + $0x18] sm:$0xff] %v166
  %183 = vst [vmem:[#allocation2 + $0x20] sm:$0xff] %v167
  %184 = vst [vmem:[#allocation2 + $0x28] sm:$0xff] %v168
  %185 = vst [vmem:[#allocation2 + $0x30] sm:$0xff] %v169
  %186 = vst [vmem:[#allocation2 + $0x38] sm:$0xff] %v170
  %187 = vst [vmem:[#allocation2 + $0x40] sm:$0xff] %v171
  %188 = vst [vmem:[#allocation2 + $0x48] sm:$0xff] %v172
  %189 = vst [vmem:[#allocation2 + $0x50] sm:$0xff] %v173
  %190 = vst [vmem:[#allocation2 + $0x58] sm:$0xff] %v174
  %191 = vst [vmem:[#allocation2 + $0x60] sm:$0xff] %v175
  %192 = vst [vmem:[#allocation2 + $0x68] sm:$0xff] %v176
  %193 = vst [vmem:[#allocation2 + $0x70] sm:$0xff] %v177
  %194 = vst [vmem:[#allocation2 + $0x78] sm:$0xff] %v178
  // Predicated region
  $region18: #{gae_forward.12} parent=0 // pred_check
    %p195 = pneg %p14
  $region19: #{gae_forward.12} parent=0 // pred_check_branch
    %197 = sbr.rel (%p195) target = $region21
  $region20: #{gae_forward.12} parent=0 // pred_region
    %v198 = vld [vmem:[#allocation2] sm:$0xff]
    %v199 = vld [vmem:[#allocation2 + $0x8] sm:$0xff]
    %v200 = vld [vmem:[#allocation2 + $0x10] sm:$0xff]
    %v201 = vld [vmem:[#allocation2 + $0x18] sm:$0xff]
    %v202 = vld [vmem:[#allocation2 + $0x20] sm:$0xff]
    %v203 = vld [vmem:[#allocation2 + $0x28] sm:$0xff]
    %v204 = vld [vmem:[#allocation2 + $0x30] sm:$0xff]
    %v205 = vld [vmem:[#allocation2 + $0x38] sm:$0xff]
    %v206 = vld [vmem:[#allocation2 + $0x40] sm:$0xff]
    %v207 = vld [vmem:[#allocation2 + $0x48] sm:$0xff]
    %v208 = vld [vmem:[#allocation2 + $0x50] sm:$0xff]
    %v209 = vld [vmem:[#allocation2 + $0x58] sm:$0xff]
    %v210 = vld [vmem:[#allocation2 + $0x60] sm:$0xff]
    %v211 = vld [vmem:[#allocation2 + $0x68] sm:$0xff]
    %v212 = vld [vmem:[#allocation2 + $0x70] sm:$0xff]
    %v213 = vld [vmem:[#allocation2 + $0x78] sm:$0xff]
    %v214 = vld [vmem:[%s2] sm:$0xff]
    %v215 = vld [vmem:[%s2 + $0x8] sm:$0xff]
    %v216 = vld [vmem:[%s2 + $0x10] sm:$0xff]
    %v217 = vld [vmem:[%s2 + $0x18] sm:$0xff]
    %v218 = vld [vmem:[%s2 + $0x20] sm:$0xff]
    %v219 = vld [vmem:[%s2 + $0x28] sm:$0xff]
    %v220 = vld [vmem:[%s2 + $0x30] sm:$0xff]
    %v221 = vld [vmem:[%s2 + $0x38] sm:$0xff]
    %v222 = vld [vmem:[%s2 + $0x40] sm:$0xff]
    %v223 = vld [vmem:[%s2 + $0x48] sm:$0xff]
    %v224 = vld [vmem:[%s2 + $0x50] sm:$0xff]
    %v225 = vld [vmem:[%s2 + $0x58] sm:$0xff]
    %v226 = vld [vmem:[%s2 + $0x60] sm:$0xff]
    %v227 = vld [vmem:[%s2 + $0x68] sm:$0xff]
    %v228 = vld [vmem:[%s2 + $0x70] sm:$0xff]
    %v229 = vld [vmem:[%s2 + $0x78] sm:$0xff]
    %v230 = vadd.f32 %v198, %v214
    %v231 = vadd.f32 %v199, %v215
    %v232 = vadd.f32 %v200, %v216
    %v233 = vadd.f32 %v201, %v217
    %v234 = vadd.f32 %v202, %v218
    %v235 = vadd.f32 %v203, %v219
    %v236 = vadd.f32 %v204, %v220
    %v237 = vadd.f32 %v205, %v221
    %v238 = vadd.f32 %v206, %v222
    %v239 = vadd.f32 %v207, %v223
    %v240 = vadd.f32 %v208, %v224
    %v241 = vadd.f32 %v209, %v225
    %v242 = vadd.f32 %v210, %v226
    %v243 = vadd.f32 %v211, %v227
    %v244 = vadd.f32 %v212, %v228
    %v245 = vadd.f32 %v213, %v229
    %246 = vst [vmem:[%s3] sm:$0xff] %v230
    %247 = vst [vmem:[%s3 + $0x8] sm:$0xff] %v231
    %248 = vst [vmem:[%s3 + $0x10] sm:$0xff] %v232
    %249 = vst [vmem:[%s3 + $0x18] sm:$0xff] %v233
    %250 = vst [vmem:[%s3 + $0x20] sm:$0xff] %v234
    %251 = vst [vmem:[%s3 + $0x28] sm:$0xff] %v235
    %252 = vst [vmem:[%s3 + $0x30] sm:$0xff] %v236
    %253 = vst [vmem:[%s3 + $0x38] sm:$0xff] %v237
    %254 = vst [vmem:[%s3 + $0x40] sm:$0xff] %v238
    %255 = vst [vmem:[%s3 + $0x48] sm:$0xff] %v239
    %256 = vst [vmem:[%s3 + $0x50] sm:$0xff] %v240
    %257 = vst [vmem:[%s3 + $0x58] sm:$0xff] %v241
    %258 = vst [vmem:[%s3 + $0x60] sm:$0xff] %v242
    %259 = vst [vmem:[%s3 + $0x68] sm:$0xff] %v243
    %260 = vst [vmem:[%s3 + $0x70] sm:$0xff] %v244
    %261 = vst [vmem:[%s3 + $0x78] sm:$0xff] %v245
  $region21: #{gae_forward.12} parent=0 // pred_fallthru
    _
  // Predicated region
  $region22: #{gae_forward.12} parent=0 // pred_check
    _
  $region23: #{gae_forward.12} parent=0 // pred_check_branch
    %263 = sbr.rel (0) target = $region25
  $region24: #{gae_forward.12} parent=0 // pred_region
    _
  $region25: #{gae_forward.12} parent=0 // pred_fallthru
    _
  // Predicated region
  $region26: #{gae_forward.12} parent=0 // pred_check
    _
  $region27: #{gae_forward.12} parent=0 // pred_check_branch
    %265 = sbr.rel (0) target = $region29
  $region28: #{gae_forward.12} parent=0 // pred_region
    _
  $region29: #{gae_forward.12} parent=0 // pred_fallthru
    _

// kernel: gae_forward.7
$region0: #{gae_forward.7}
  #allocation0 [shape = 'u32[]', space=smem, size = 0x4, offset = 0x4, fixed_abs, tag = 'smem constant byte address 0x4 - core index']
  #allocation1 [shape = 'u32[72,128]{1,0:T(1,128)}', space=vmem, size = 0x9000, scoped, tag = 'internal scratch']
  %s0 = inlined_call_operand.vmem [shape: f32[128,128], index: 0, kind: input, shape index: {}]
  %s1 = inlined_call_operand.vmem [shape: f32[128,128], index: 1, kind: input, shape index: {}]
  %s2 = inlined_call_operand.vmem [shape: f32[128,128], index: 2, kind: input, shape index: {}]
  %s3 = inlined_call_operand.vmem [shape: f32[1,128], index: 3, kind: input, shape index: {}]
  %s4 = inlined_call_operand.vmem [shape: f32[128,128], index: 4, kind: output, shape index: {0}]
  %s5 = inlined_call_operand.vmem [shape: f32[128,128], index: 5, kind: output, shape index: {1}]
  %6 = xla_tuple %s4, %s5
  %s7 = sld [smem:[#allocation0]]
  $region34: #{gae_forward.7} parent=0
    _
  %s9 = ssub.s32 1, %s7
  %s10 = scalar_select 0, %s9, %s7
  // Predicated region
  $region2: #{gae_forward.7} parent=0 // pred_check
    _
  $region3: #{gae_forward.7} parent=0 // pred_check_branch
    %12 = sbr.rel (0) target = $region5
  $region4: #{gae_forward.7} parent=0 // pred_region
    _
  $region5: #{gae_forward.7} parent=0 // pred_fallthru
    _
  // Predicated region
  $region6: #{gae_forward.7} parent=0 // pred_check
    _
  $region7: #{gae_forward.7} parent=0 // pred_check_branch
    %14 = sbr.rel (0) target = $region9
  $region8: #{gae_forward.7} parent=0 // pred_region
    _
  $region9: #{gae_forward.7} parent=0 // pred_fallthru
    _
  // Predicated region
  $region10: #{gae_forward.7} parent=0 // pred_check
    _
  $region11: #{gae_forward.7} parent=0 // pred_check_branch
    %16 = sbr.rel (0) target = $region13
  $region12: #{gae_forward.7} parent=0 // pred_region
    _
  $region13: #{gae_forward.7} parent=0 // pred_fallthru
    _
  // Predicated region
  $region14: #{gae_forward.7} parent=0 // pred_check
    _
  $region15: #{gae_forward.7} parent=0 // pred_check_branch
    %18 = sbr.rel (0) target = $region17
  $region16: #{gae_forward.7} parent=0 // pred_region
    _
  $region17: #{gae_forward.7} parent=0 // pred_fallthru
    _
  %v19 = vld [vmem:[%s0] sm:$0xff]
  %v20 = vld [vmem:[%s0 + $0x8] sm:$0xff]
  %v21 = vld [vmem:[%s0 + $0x10] sm:$0xff]
  %v22 = vld [vmem:[%s0 + $0x18] sm:$0xff]
  %v23 = vld [vmem:[%s0 + $0x20] sm:$0xff]
  %v24 = vld [vmem:[%s0 + $0x28] sm:$0xff]
  %v25 = vld [vmem:[%s0 + $0x30] sm:$0xff]
  %v26 = vld [vmem:[%s0 + $0x38] sm:$0xff]
  %v27 = vld [vmem:[%s0 + $0x40] sm:$0xff]
  %v28 = vld [vmem:[%s0 + $0x48] sm:$0xff]
  %v29 = vld [vmem:[%s0 + $0x50] sm:$0xff]
  %v30 = vld [vmem:[%s0 + $0x58] sm:$0xff]
  %v31 = vld [vmem:[%s0 + $0x60] sm:$0xff]
  %v32 = vld [vmem:[%s0 + $0x68] sm:$0xff]
  %v33 = vld [vmem:[%s0 + $0x70] sm:$0xff]
  %v34 = vld [vmem:[%s0 + $0x78] sm:$0xff]
  %v35 = vld [vmem:[%s1] sm:$0xff]
  %v36 = vld [vmem:[%s1 + $0x8] sm:$0xff]
  %v37 = vld [vmem:[%s1 + $0x10] sm:$0xff]
  %v38 = vld [vmem:[%s1 + $0x18] sm:$0xff]
  %v39 = vld [vmem:[%s1 + $0x20] sm:$0xff]
  %v40 = vld [vmem:[%s1 + $0x28] sm:$0xff]
  %v41 = vld [vmem:[%s1 + $0x30] sm:$0xff]
  %v42 = vld [vmem:[%s1 + $0x38] sm:$0xff]
  %v43 = vld [vmem:[%s1 + $0x40] sm:$0xff]
  %v44 = vld [vmem:[%s1 + $0x48] sm:$0xff]
  %v45 = vld [vmem:[%s1 + $0x50] sm:$0xff]
  %v46 = vld [vmem:[%s1 + $0x58] sm:$0xff]
  %v47 = vld [vmem:[%s1 + $0x60] sm:$0xff]
  %v48 = vld [vmem:[%s1 + $0x68] sm:$0xff]
  %v49 = vld [vmem:[%s1 + $0x70] sm:$0xff]
  %v50 = vld [vmem:[%s1 + $0x78] sm:$0xff]
  %v51 = vld [vmem:[%s3] sm:$0x1]
  %v53 = vperm.slane %v51, 0
  %55 = vmatpush.msra.mxu0 %v50
  %56 = vmatpush.msra.mxu0 %v49
  %57 = vmatpush.msra.mxu0 %v48
  %58 = vmatpush.msra.mxu0 %v47
  %59 = vmatpush.msra.mxu0 %v46
  %60 = vmatpush.msra.mxu0 %v45
  %61 = vmatpush.msra.mxu0 %v44
  %62 = vmatpush.msra.mxu0 %v43
  %63 = vmatpush.msra.mxu0 %v42
  %64 = vmatpush.msra.mxu0 %v41
  %65 = vmatpush.msra.mxu0 %v40
  %66 = vmatpush.msra.mxu0 %v39
  %67 = vmatpush.msra.mxu0 %v38
  %68 = vmatpush.msra.mxu0 %v37
  %69 = vmatpush.msra.mxu0 %v36
  %70 = vmatpush.msra.mxu0 %v35
  %71 = vmatmul.f32.gmra.mxu0 %v19
  %v72 = vpop.f32.mrf.mxu0
  %v73 = vadd.f32 %v53, %v72
  %74 = vmatmul.f32.gmra.mxu0 %v20
  %v75 = vpop.f32.mrf.mxu0
  %v76 = vadd.f32 %v53, %v75
  %77 = vmatmul.f32.gmra.mxu0 %v21
  %v78 = vpop.f32.mrf.mxu0
  %v79 = vadd.f32 %v53, %v78
  %80 = vmatmul.f32.gmra.mxu0 %v22
  %v81 = vpop.f32.mrf.mxu0
  %v82 = vadd.f32 %v53, %v81
  %83 = vmatmul.f32.gmra.mxu0 %v23
  %v84 = vpop.f32.mrf.mxu0
  %v85 = vadd.f32 %v53, %v84
  %86 = vmatmul.f32.gmra.mxu0 %v24
  %v87 = vpop.f32.mrf.mxu0
  %v88 = vadd.f32 %v53, %v87
  %89 = vmatmul.f32.gmra.mxu0 %v25
  %v90 = vpop.f32.mrf.mxu0
  %v91 = vadd.f32 %v53, %v90
  %92 = vmatmul.f32.gmra.mxu0 %v26
  %v93 = vpop.f32.mrf.mxu0
  %v94 = vadd.f32 %v53, %v93
  %95 = vmatmul.f32.gmra.mxu0 %v27
  %v96 = vpop.f32.mrf.mxu0
  %v97 = vadd.f32 %v53, %v96
  %98 = vmatmul.f32.gmra.mxu0 %v28
  %v99 = vpop.f32.mrf.mxu0
  %v100 = vadd.f32 %v53, %v99
  %101 = vmatmul.f32.gmra.mxu0 %v29
  %v102 = vpop.f32.mrf.mxu0
  %v103 = vadd.f32 %v53, %v102
  %104 = vmatmul.f32.gmra.mxu0 %v30
  %v105 = vpop.f32.mrf.mxu0
  %v106 = vadd.f32 %v53, %v105
  %107 = vmatmul.f32.gmra.mxu0 %v31
  %v108 = vpop.f32.mrf.mxu0
  %v109 = vadd.f32 %v53, %v108
  %110 = vmatmul.f32.gmra.mxu0 %v32
  %v111 = vpop.f32.mrf.mxu0
  %v112 = vadd.f32 %v53, %v111
  %113 = vmatmul.f32.gmra.mxu0 %v33
  %v114 = vpop.f32.mrf.mxu0
  %v115 = vadd.f32 %v53, %v114
  %116 = vmatmul.f32.gmra.mxu0 %v34
  %v117 = vpop.f32.mrf.mxu0
  %v118 = vadd.f32 %v53, %v117
  %119 = vdwg.mxu0
  %120 = vst [vmem:[%s4] sm:$0xff] %v73
  %121 = vst [vmem:[%s4 + $0x8] sm:$0xff] %v76
  %122 = vst [vmem:[%s4 + $0x10] sm:$0xff] %v79
  %123 = vst [vmem:[%s4 + $0x18] sm:$0xff] %v82
  %124 = vst [vmem:[%s4 + $0x20] sm:$0xff] %v85
  %125 = vst [vmem:[%s4 + $0x28] sm:$0xff] %v88
  %126 = vst [vmem:[%s4 + $0x30] sm:$0xff] %v91
  %127 = vst [vmem:[%s4 + $0x38] sm:$0xff] %v94
  %128 = vst [vmem:[%s4 + $0x40] sm:$0xff] %v97
  %129 = vst [vmem:[%s4 + $0x48] sm:$0xff] %v100
  %130 = vst [vmem:[%s4 + $0x50] sm:$0xff] %v103
  %131 = vst [vmem:[%s4 + $0x58] sm:$0xff] %v106
  %132 = vst [vmem:[%s4 + $0x60] sm:$0xff] %v109
  %133 = vst [vmem:[%s4 + $0x68] sm:$0xff] %v112
  %134 = vst [vmem:[%s4 + $0x70] sm:$0xff] %v115
  %135 = vst [vmem:[%s4 + $0x78] sm:$0xff] %v118
  %v136 = vld [vmem:[%s2] sm:$0xff]
  %v137 = vld [vmem:[%s2 + $0x8] sm:$0xff]
  %v138 = vld [vmem:[%s2 + $0x10] sm:$0xff]
  %v139 = vld [vmem:[%s2 + $0x18] sm:$0xff]
  %v140 = vld [vmem:[%s2 + $0x20] sm:$0xff]
  %v141 = vld [vmem:[%s2 + $0x28] sm:$0xff]
  %v142 = vld [vmem:[%s2 + $0x30] sm:$0xff]
  %v143 = vld [vmem:[%s2 + $0x38] sm:$0xff]
  %v144 = vld [vmem:[%s2 + $0x40] sm:$0xff]
  %v145 = vld [vmem:[%s2 + $0x48] sm:$0xff]
  %v146 = vld [vmem:[%s2 + $0x50] sm:$0xff]
  %v147 = vld [vmem:[%s2 + $0x58] sm:$0xff]
  %v148 = vld [vmem:[%s2 + $0x60] sm:$0xff]
  %v149 = vld [vmem:[%s2 + $0x68] sm:$0xff]
  %v150 = vld [vmem:[%s2 + $0x70] sm:$0xff]
  %v151 = vld [vmem:[%s2 + $0x78] sm:$0xff]
  %152 = vmatpush.msra.mxu0 %v151
  %153 = vmatpush.msra.mxu0 %v150
  %154 = vmatpush.msra.mxu0 %v149
  %155 = vmatpush.msra.mxu0 %v148
  %156 = vmatpush.msra.mxu0 %v147
  %157 = vmatpush.msra.mxu0 %v146
  %158 = vmatpush.msra.mxu0 %v145
  %159 = vmatpush.msra.mxu0 %v144
  %160 = vmatpush.msra.mxu0 %v143
  %161 = vmatpush.msra.mxu0 %v142
  %162 = vmatpush.msra.mxu0 %v141
  %163 = vmatpush.msra.mxu0 %v140
  %164 = vmatpush.msra.mxu0 %v139
  %165 = vmatpush.msra.mxu0 %v138
  %166 = vmatpush.msra.mxu0 %v137
  %167 = vmatpush.msra.mxu0 %v136
  %168 = vmatmul.f32.gmra.mxu0 %v19
  %v169 = vpop.f32.mrf.mxu0
  %v170 = vadd.f32 0.0, %v169
  %171 = vmatmul.f32.gmra.mxu0 %v20
  %v172 = vpop.f32.mrf.mxu0
  %v173 = vadd.f32 0.0, %v172
  %174 = vmatmul.f32.gmra.mxu0 %v21
  %v175 = vpop.f32.mrf.mxu0
  %v176 = vadd.f32 0.0, %v175
  %177 = vmatmul.f32.gmra.mxu0 %v22
  %v178 = vpop.f32.mrf.mxu0
  %v179 = vadd.f32 0.0, %v178
  %180 = vmatmul.f32.gmra.mxu0 %v23
  %v181 = vpop.f32.mrf.mxu0
  %v182 = vadd.f32 0.0, %v181
  %183 = vmatmul.f32.gmra.mxu0 %v24
  %v184 = vpop.f32.mrf.mxu0
  %v185 = vadd.f32 0.0, %v184
  %186 = vmatmul.f32.gmra.mxu0 %v25
  %v187 = vpop.f32.mrf.mxu0
  %v188 = vadd.f32 0.0, %v187
  %189 = vmatmul.f32.gmra.mxu0 %v26
  %v190 = vpop.f32.mrf.mxu0
  %v191 = vadd.f32 0.0, %v190
  %192 = vmatmul.f32.gmra.mxu0 %v27
  %v193 = vpop.f32.mrf.mxu0
  %v194 = vadd.f32 0.0, %v193
  %195 = vmatmul.f32.gmra.mxu0 %v28
  %v196 = vpop.f32.mrf.mxu0
  %v197 = vadd.f32 0.0, %v196
  %198 = vmatmul.f32.gmra.mxu0 %v29
  %v199 = vpop.f32.mrf.mxu0
  %v200 = vadd.f32 0.0, %v199
  %201 = vmatmul.f32.gmra.mxu0 %v30
  %v202 = vpop.f32.mrf.mxu0
  %v203 = vadd.f32 0.0, %v202
  %204 = vmatmul.f32.gmra.mxu0 %v31
  %v205 = vpop.f32.mrf.mxu0
  %v206 = vadd.f32 0.0, %v205
  %207 = vmatmul.f32.gmra.mxu0 %v32
  %v208 = vpop.f32.mrf.mxu0
  %v209 = vadd.f32 0.0, %v208
  %210 = vmatmul.f32.gmra.mxu0 %v33
  %v211 = vpop.f32.mrf.mxu0
  %v212 = vadd.f32 0.0, %v211
  %213 = vmatmul.f32.gmra.mxu0 %v34
  %v214 = vpop.f32.mrf.mxu0
  %v215 = vadd.f32 0.0, %v214
  %216 = vdwg.mxu0
  %217 = vst [vmem:[%s5] sm:$0xff] %v170
  %218 = vst [vmem:[%s5 + $0x8] sm:$0xff] %v173
  %219 = vst [vmem:[%s5 + $0x10] sm:$0xff] %v176
  %220 = vst [vmem:[%s5 + $0x18] sm:$0xff] %v179
  %221 = vst [vmem:[%s5 + $0x20] sm:$0xff] %v182
  %222 = vst [vmem:[%s5 + $0x28] sm:$0xff] %v185
  %223 = vst [vmem:[%s5 + $0x30] sm:$0xff] %v188
  %224 = vst [vmem:[%s5 + $0x38] sm:$0xff] %v191
  %225 = vst [vmem:[%s5 + $0x40] sm:$0xff] %v194
  %226 = vst [vmem:[%s5 + $0x48] sm:$0xff] %v197
  %227 = vst [vmem:[%s5 + $0x50] sm:$0xff] %v200
  %228 = vst [vmem:[%s5 + $0x58] sm:$0xff] %v203
  %229 = vst [vmem:[%s5 + $0x60] sm:$0xff] %v206
  %230 = vst [vmem:[%s5 + $0x68] sm:$0xff] %v209
  %231 = vst [vmem:[%s5 + $0x70] sm:$0xff] %v212
  %232 = vst [vmem:[%s5 + $0x78] sm:$0xff] %v215
  // Predicated region
  $region18: #{gae_forward.7} parent=0 // pred_check
    _
  $region19: #{gae_forward.7} parent=0 // pred_check_branch
    %234 = sbr.rel (0) target = $region21
  $region20: #{gae_forward.7} parent=0 // pred_region
    _
  $region21: #{gae_forward.7} parent=0 // pred_fallthru
    _
  // Predicated region
  $region22: #{gae_forward.7} parent=0 // pred_check
    _
  $region23: #{gae_forward.7} parent=0 // pred_check_branch
    %236 = sbr.rel (0) target = $region25
  $region24: #{gae_forward.7} parent=0 // pred_region
    _
  $region25: #{gae_forward.7} parent=0 // pred_fallthru
    _
  // Predicated region
  $region26: #{gae_forward.7} parent=0 // pred_check
    _
  $region27: #{gae_forward.7} parent=0 // pred_check_branch
    %238 = sbr.rel (0) target = $region29
  $region28: #{gae_forward.7} parent=0 // pred_region
    _
  $region29: #{gae_forward.7} parent=0 // pred_fallthru
    _
  // Predicated region
  $region30: #{gae_forward.7} parent=0 // pred_check
    _
  $region31: #{gae_forward.7} parent=0 // pred_check_branch
    %240 = sbr.rel (0) target = $region33
  $region32: #{gae_forward.7} parent=0 // pred_region
    _
  $region33: #{gae_forward.7} parent=0 // pred_fallthru
    _

// kernel: gae_forward.8
$region0: #{gae_forward.8}
  #allocation0 [shape = 'u32[]', space=smem, size = 0x4, offset = 0x4, fixed_abs, tag = 'smem constant byte address 0x4 - core index']
  #allocation1 [shape = 'u32[72,128]{1,0:T(1,128)}', space=vmem, size = 0x9000, scoped, tag = 'internal scratch']
  #allocation2 [shape = 'f32[128,128]{1,0:T(8,128)}', space=vmem, size = 0x10000, scoped, tag = 'scratch operand']
  %s0 = inlined_call_operand.vmem [shape: bf16[128,128], index: 0, kind: input, shape index: {}]
  %s1 = inlined_call_operand.vmem [shape: f32[128,128], index: 1, kind: input, shape index: {}]
  %s2 = inlined_call_operand.vmem [shape: f32[128,128], index: 2, kind: input, shape index: {}]
  %s3 = inlined_call_operand.vmem [shape: f32[128,128], index: 3, kind: output, shape index: {}]
  %s4 = sld [smem:[#allocation0]]
  $region30: #{gae_forward.8} parent=0
    _
  %s6 = ssub.s32 1, %s4
  %s7 = scalar_select 0, %s6, %s4
  // Predicated region
  $region2: #{gae_forward.8} parent=0 // pred_check
    _
  $region3: #{gae_forward.8} parent=0 // pred_check_branch
    %9 = sbr.rel (0) target = $region5
  $region4: #{gae_forward.8} parent=0 // pred_region
    _
  $region5: #{gae_forward.8} parent=0 // pred_fallthru
    _
  // Predicated region
  $region6: #{gae_forward.8} parent=0 // pred_check
    _
  $region7: #{gae_forward.8} parent=0 // pred_check_branch
    %11 = sbr.rel (0) target = $region9
  $region8: #{gae_forward.8} parent=0 // pred_region
    _
  $region9: #{gae_forward.8} parent=0 // pred_fallthru
    _
  // Predicated region
  $region10: #{gae_forward.8} parent=0 // pred_check
    _
  $region11: #{gae_forward.8} parent=0 // pred_check_branch
    %13 = sbr.rel (0) target = $region13
  $region12: #{gae_forward.8} parent=0 // pred_region
    _
  $region13: #{gae_forward.8} parent=0 // pred_fallthru
    _
  %p14 = scmp.eq.s32.totalorder 0, 0
  // Predicated region
  $region14: #{gae_forward.8} parent=0 // pred_check
    %p15 = pneg %p14
  $region15: #{gae_forward.8} parent=0 // pred_check_branch
    %17 = sbr.rel (%p15) target = $region17
  $region16: #{gae_forward.8} parent=0 // pred_region
    %18 = vst [vmem:[#allocation2] sm:$0xff] 0.0
    %19 = vst [vmem:[#allocation2 + $0x8] sm:$0xff] 0.0
    %20 = vst [vmem:[#allocation2 + $0x10] sm:$0xff] 0.0
    %21 = vst [vmem:[#allocation2 + $0x18] sm:$0xff] 0.0
    %22 = vst [vmem:[#allocation2 + $0x20] sm:$0xff] 0.0
    %23 = vst [vmem:[#allocation2 + $0x28] sm:$0xff] 0.0
    %24 = vst [vmem:[#allocation2 + $0x30] sm:$0xff] 0.0
    %25 = vst [vmem:[#allocation2 + $0x38] sm:$0xff] 0.0
    %26 = vst [vmem:[#allocation2 + $0x40] sm:$0xff] 0.0
    %27 = vst [vmem:[#allocation2 + $0x48] sm:$0xff] 0.0
    %28 = vst [vmem:[#allocation2 + $0x50] sm:$0xff] 0.0
    %29 = vst [vmem:[#allocation2 + $0x58] sm:$0xff] 0.0
    %30 = vst [vmem:[#allocation2 + $0x60] sm:$0xff] 0.0
    %31 = vst [vmem:[#allocation2 + $0x68] sm:$0xff] 0.0
    %32 = vst [vmem:[#allocation2 + $0x70] sm:$0xff] 0.0
    %33 = vst [vmem:[#allocation2 + $0x78] sm:$0xff] 0.0
  $region17: #{gae_forward.8} parent=0 // pred_fallthru
    _
  %v34 = vld [vmem:[#allocation2] sm:$0xff]
  %v35 = vld [vmem:[#allocation2 + $0x8] sm:$0xff]
  %v36 = vld [vmem:[#allocation2 + $0x10] sm:$0xff]
  %v37 = vld [vmem:[#allocation2 + $0x18] sm:$0xff]
  %v38 = vld [vmem:[#allocation2 + $0x20] sm:$0xff]
  %v39 = vld [vmem:[#allocation2 + $0x28] sm:$0xff]
  %v40 = vld [vmem:[#allocation2 + $0x30] sm:$0xff]
  %v41 = vld [vmem:[#allocation2 + $0x38] sm:$0xff]
  %v42 = vld [vmem:[#allocation2 + $0x40] sm:$0xff]
  %v43 = vld [vmem:[#allocation2 + $0x48] sm:$0xff]
  %v44 = vld [vmem:[#allocation2 + $0x50] sm:$0xff]
  %v45 = vld [vmem:[#allocation2 + $0x58] sm:$0xff]
  %v46 = vld [vmem:[#allocation2 + $0x60] sm:$0xff]
  %v47 = vld [vmem:[#allocation2 + $0x68] sm:$0xff]
  %v48 = vld [vmem:[#allocation2 + $0x70] sm:$0xff]
  %v49 = vld [vmem:[#allocation2 + $0x78] sm:$0xff]
  %v50 = vld [vmem:[%s0] sm:$0xf]
  %v51 = vld [vmem:[%s0 + $0x4] sm:$0xf]
  %v52 = vld [vmem:[%s0 + $0x8] sm:$0xf]
  %v53 = vld [vmem:[%s0 + $0xc] sm:$0xf]
  %v54 = vld [vmem:[%s0 + $0x10] sm:$0xf]
  %v55 = vld [vmem:[%s0 + $0x14] sm:$0xf]
  %v56 = vld [vmem:[%s0 + $0x18] sm:$0xf]
  %v57 = vld [vmem:[%s0 + $0x1c] sm:$0xf]
  %v58 = vld [vmem:[%s0 + $0x20] sm:$0xf]
  %v59 = vld [vmem:[%s0 + $0x24] sm:$0xf]
  %v60 = vld [vmem:[%s0 + $0x28] sm:$0xf]
  %v61 = vld [vmem:[%s0 + $0x2c] sm:$0xf]
  %v62 = vld [vmem:[%s0 + $0x30] sm:$0xf]
  %v63 = vld [vmem:[%s0 + $0x34] sm:$0xf]
  %v64 = vld [vmem:[%s0 + $0x38] sm:$0xf]
  %v65 = vld [vmem:[%s0 + $0x3c] sm:$0xf]
  %v66 = vunpack.c.l.bf16 %v50
  %v67 = vunpack.c.l.bf16 %v51
  %v68 = vunpack.c.l.bf16 %v52
  %v69 = vunpack.c.l.bf16 %v53
  %v70 = vunpack.c.l.bf16 %v54
  %v71 = vunpack.c.l.bf16 %v55
  %v72 = vunpack.c.l.bf16 %v56
  %v73 = vunpack.c.l.bf16 %v57
  %v74 = vunpack.c.l.bf16 %v58
  %v75 = vunpack.c.l.bf16 %v59
  %v76 = vunpack.c.l.bf16 %v60
  %v77 = vunpack.c.l.bf16 %v61
  %v78 = vunpack.c.l.bf16 %v62
  %v79 = vunpack.c.l.bf16 %v63
  %v80 = vunpack.c.l.bf16 %v64
  %v81 = vunpack.c.l.bf16 %v65
  %v82 = vld [vmem:[%s1] sm:$0xff]
  %v83 = vld [vmem:[%s1 + $0x8] sm:$0xff]
  %v84 = vld [vmem:[%s1 + $0x10] sm:$0xff]
  %v85 = vld [vmem:[%s1 + $0x18] sm:$0xff]
  %v86 = vld [vmem:[%s1 + $0x20] sm:$0xff]
  %v87 = vld [vmem:[%s1 + $0x28] sm:$0xff]
  %v88 = vld [vmem:[%s1 + $0x30] sm:$0xff]
  %v89 = vld [vmem:[%s1 + $0x38] sm:$0xff]
  %v90 = vld [vmem:[%s1 + $0x40] sm:$0xff]
  %v91 = vld [vmem:[%s1 + $0x48] sm:$0xff]
  %v92 = vld [vmem:[%s1 + $0x50] sm:$0xff]
  %v93 = vld [vmem:[%s1 + $0x58] sm:$0xff]
  %v94 = vld [vmem:[%s1 + $0x60] sm:$0xff]
  %v95 = vld [vmem:[%s1 + $0x68] sm:$0xff]
  %v96 = vld [vmem:[%s1 + $0x70] sm:$0xff]
  %v97 = vld [vmem:[%s1 + $0x78] sm:$0xff]
  %98 = vmatpush.msra.mxu0 %v97
  %99 = vmatpush.msra.mxu0 %v96
  %100 = vmatpush.msra.mxu0 %v95
  %101 = vmatpush.msra.mxu0 %v94
  %102 = vmatpush.msra.mxu0 %v93
  %103 = vmatpush.msra.mxu0 %v92
  %104 = vmatpush.msra.mxu0 %v91
  %105 = vmatpush.msra.mxu0 %v90
  %106 = vmatpush.msra.mxu0 %v89
  %107 = vmatpush.msra.mxu0 %v88
  %108 = vmatpush.msra.mxu0 %v87
  %109 = vmatpush.msra.mxu0 %v86
  %110 = vmatpush.msra.mxu0 %v85
  %111 = vmatpush.msra.mxu0 %v84
  %112 = vmatpush.msra.mxu0 %v83
  %113 = vmatpush.msra.mxu0 %v82
  %114 = vmatmul.f32.gmra.mxu0 %v66
  %v115 = vpop.f32.mrf.mxu0
  %v116 = vadd.f32 0.0, %v115
  %117 = vmatmul.f32.gmra.mxu0 %v67
  %v118 = vpop.f32.mrf.mxu0
  %v119 = vadd.f32 0.0, %v118
  %120 = vmatmul.f32.gmra.mxu0 %v68
  %v121 = vpop.f32.mrf.mxu0
  %v122 = vadd.f32 0.0, %v121
  %123 = vmatmul.f32.gmra.mxu0 %v69
  %v124 = vpop.f32.mrf.mxu0
  %v125 = vadd.f32 0.0, %v124
  %126 = vmatmul.f32.gmra.mxu0 %v70
  %v127 = vpop.f32.mrf.mxu0
  %v128 = vadd.f32 0.0, %v127
  %129 = vmatmul.f32.gmra.mxu0 %v71
  %v130 = vpop.f32.mrf.mxu0
  %v131 = vadd.f32 0.0, %v130
  %132 = vmatmul.f32.gmra.mxu0 %v72
  %v133 = vpop.f32.mrf.mxu0
  %v134 = vadd.f32 0.0, %v133
  %135 = vmatmul.f32.gmra.mxu0 %v73
  %v136 = vpop.f32.mrf.mxu0
  %v137 = vadd.f32 0.0, %v136
  %138 = vmatmul.f32.gmra.mxu0 %v74
  %v139 = vpop.f32.mrf.mxu0
  %v140 = vadd.f32 0.0, %v139
  %141 = vmatmul.f32.gmra.mxu0 %v75
  %v142 = vpop.f32.mrf.mxu0
  %v143 = vadd.f32 0.0, %v142
  %144 = vmatmul.f32.gmra.mxu0 %v76
  %v145 = vpop.f32.mrf.mxu0
  %v146 = vadd.f32 0.0, %v145
  %147 = vmatmul.f32.gmra.mxu0 %v77
  %v148 = vpop.f32.mrf.mxu0
  %v149 = vadd.f32 0.0, %v148
  %150 = vmatmul.f32.gmra.mxu0 %v78
  %v151 = vpop.f32.mrf.mxu0
  %v152 = vadd.f32 0.0, %v151
  %153 = vmatmul.f32.gmra.mxu0 %v79
  %v154 = vpop.f32.mrf.mxu0
  %v155 = vadd.f32 0.0, %v154
  %156 = vmatmul.f32.gmra.mxu0 %v80
  %v157 = vpop.f32.mrf.mxu0
  %v158 = vadd.f32 0.0, %v157
  %159 = vmatmul.f32.gmra.mxu0 %v81
  %v160 = vpop.f32.mrf.mxu0
  %v161 = vadd.f32 0.0, %v160
  %162 = vdwg.mxu0
  %v163 = vadd.f32 %v34, %v116
  %v164 = vadd.f32 %v35, %v119
  %v165 = vadd.f32 %v36, %v122
  %v166 = vadd.f32 %v37, %v125
  %v167 = vadd.f32 %v38, %v128
  %v168 = vadd.f32 %v39, %v131
  %v169 = vadd.f32 %v40, %v134
  %v170 = vadd.f32 %v41, %v137
  %v171 = vadd.f32 %v42, %v140
  %v172 = vadd.f32 %v43, %v143
  %v173 = vadd.f32 %v44, %v146
  %v174 = vadd.f32 %v45, %v149
  %v175 = vadd.f32 %v46, %v152
  %v176 = vadd.f32 %v47, %v155
  %v177 = vadd.f32 %v48, %v158
  %v178 = vadd.f32 %v49, %v161
  %179 = vst [vmem:[#allocation2] sm:$0xff] %v163
  %180 = vst [vmem:[#allocation2 + $0x8] sm:$0xff] %v164
  %181 = vst [vmem:[#allocation2 + $0x10] sm:$0xff] %v165
  %182 = vst [vmem:[#allocation2 + $0x18] sm:$0xff] %v166
  %183 = vst [vmem:[#allocation2 + $0x20] sm:$0xff] %v167
  %184 = vst [vmem:[#allocation2 + $0x28] sm:$0xff] %v168
  %185 = vst [vmem:[#allocation2 + $0x30] sm:$0xff] %v169
  %186 = vst [vmem:[#allocation2 + $0x38] sm:$0xff] %v170
  %187 = vst [vmem:[#allocation2 + $0x40] sm:$0xff] %v171
  %188 = vst [vmem:[#allocation2 + $0x48] sm:$0xff] %v172
  %189 = vst [vmem:[#allocation2 + $0x50] sm:$0xff] %v173
  %190 = vst [vmem:[#allocation2 + $0x58] sm:$0xff] %v174
  %191 = vst [vmem:[#allocation2 + $0x60] sm:$0xff] %v175
  %192 = vst [vmem:[#allocation2 + $0x68] sm:$0xff] %v176
  %193 = vst [vmem:[#allocation2 + $0x70] sm:$0xff] %v177
  %194 = vst [vmem:[#allocation2 + $0x78] sm:$0xff] %v178
  // Predicated region
  $region18: #{gae_forward.8} parent=0 // pred_check
    %p195 = pneg %p14
  $region19: #{gae_forward.8} parent=0 // pred_check_branch
    %197 = sbr.rel (%p195) target = $region21
  $region20: #{gae_forward.8} parent=0 // pred_region
    %v198 = vld [vmem:[#allocation2] sm:$0xff]
    %v199 = vld [vmem:[#allocation2 + $0x8] sm:$0xff]
    %v200 = vld [vmem:[#allocation2 + $0x10] sm:$0xff]
    %v201 = vld [vmem:[#allocation2 + $0x18] sm:$0xff]
    %v202 = vld [vmem:[#allocation2 + $0x20] sm:$0xff]
    %v203 = vld [vmem:[#allocation2 + $0x28] sm:$0xff]
    %v204 = vld [vmem:[#allocation2 + $0x30] sm:$0xff]
    %v205 = vld [vmem:[#allocation2 + $0x38] sm:$0xff]
    %v206 = vld [vmem:[#allocation2 + $0x40] sm:$0xff]
    %v207 = vld [vmem:[#allocation2 + $0x48] sm:$0xff]
    %v208 = vld [vmem:[#allocation2 + $0x50] sm:$0xff]
    %v209 = vld [vmem:[#allocation2 + $0x58] sm:$0xff]
    %v210 = vld [vmem:[#allocation2 + $0x60] sm:$0xff]
    %v211 = vld [vmem:[#allocation2 + $0x68] sm:$0xff]
    %v212 = vld [vmem:[#allocation2 + $0x70] sm:$0xff]
    %v213 = vld [vmem:[#allocation2 + $0x78] sm:$0xff]
    %v214 = vld [vmem:[%s2] sm:$0xff]
    %v215 = vld [vmem:[%s2 + $0x8] sm:$0xff]
    %v216 = vld [vmem:[%s2 + $0x10] sm:$0xff]
    %v217 = vld [vmem:[%s2 + $0x18] sm:$0xff]
    %v218 = vld [vmem:[%s2 + $0x20] sm:$0xff]
    %v219 = vld [vmem:[%s2 + $0x28] sm:$0xff]
    %v220 = vld [vmem:[%s2 + $0x30] sm:$0xff]
    %v221 = vld [vmem:[%s2 + $0x38] sm:$0xff]
    %v222 = vld [vmem:[%s2 + $0x40] sm:$0xff]
    %v223 = vld [vmem:[%s2 + $0x48] sm:$0xff]
    %v224 = vld [vmem:[%s2 + $0x50] sm:$0xff]
    %v225 = vld [vmem:[%s2 + $0x58] sm:$0xff]
    %v226 = vld [vmem:[%s2 + $0x60] sm:$0xff]
    %v227 = vld [vmem:[%s2 + $0x68] sm:$0xff]
    %v228 = vld [vmem:[%s2 + $0x70] sm:$0xff]
    %v229 = vld [vmem:[%s2 + $0x78] sm:$0xff]
    %v230 = vadd.f32 %v198, %v214
    %v231 = vadd.f32 %v199, %v215
    %v232 = vadd.f32 %v200, %v216
    %v233 = vadd.f32 %v201, %v217
    %v234 = vadd.f32 %v202, %v218
    %v235 = vadd.f32 %v203, %v219
    %v236 = vadd.f32 %v204, %v220
    %v237 = vadd.f32 %v205, %v221
    %v238 = vadd.f32 %v206, %v222
    %v239 = vadd.f32 %v207, %v223
    %v240 = vadd.f32 %v208, %v224
    %v241 = vadd.f32 %v209, %v225
    %v242 = vadd.f32 %v210, %v226
    %v243 = vadd.f32 %v211, %v227
    %v244 = vadd.f32 %v212, %v228
    %v245 = vadd.f32 %v213, %v229
    %v246 = vmax.f32 %v230, 0.0
    %v247 = vmax.f32 %v231, 0.0
    %v248 = vmax.f32 %v232, 0.0
    %v249 = vmax.f32 %v233, 0.0
    %v250 = vmax.f32 %v234, 0.0
    %v251 = vmax.f32 %v235, 0.0
    %v252 = vmax.f32 %v236, 0.0
    %v253 = vmax.f32 %v237, 0.0
    %v254 = vmax.f32 %v238, 0.0
    %v255 = vmax.f32 %v239, 0.0
    %v256 = vmax.f32 %v240, 0.0
    %v257 = vmax.f32 %v241, 0.0
    %v258 = vmax.f32 %v242, 0.0
    %v259 = vmax.f32 %v243, 0.0
    %v260 = vmax.f32 %v244, 0.0
    %v261 = vmax.f32 %v245, 0.0
    %262 = vst [vmem:[%s3] sm:$0xff] %v246
    %263 = vst [vmem:[%s3 + $0x8] sm:$0xff] %v247
    %264 = vst [vmem:[%s3 + $0x10] sm:$0xff] %v248
    %265 = vst [vmem:[%s3 + $0x18] sm:$0xff] %v249
    %266 = vst [vmem:[%s3 + $0x20] sm:$0xff] %v250
    %267 = vst [vmem:[%s3 + $0x28] sm:$0xff] %v251
    %268 = vst [vmem:[%s3 + $0x30] sm:$0xff] %v252
    %269 = vst [vmem:[%s3 + $0x38] sm:$0xff] %v253
    %270 = vst [vmem:[%s3 + $0x40] sm:$0xff] %v254
    %271 = vst [vmem:[%s3 + $0x48] sm:$0xff] %v255
    %272 = vst [vmem:[%s3 + $0x50] sm:$0xff] %v256
    %273 = vst [vmem:[%s3 + $0x58] sm:$0xff] %v257
    %274 = vst [vmem:[%s3 + $0x60] sm:$0xff] %v258
    %275 = vst [vmem:[%s3 + $0x68] sm:$0xff] %v259
    %276 = vst [vmem:[%s3 + $0x70] sm:$0xff] %v260
    %277 = vst [vmem:[%s3 + $0x78] sm:$0xff] %v261
  $region21: #{gae_forward.8} parent=0 // pred_fallthru
    _
  // Predicated region
  $region22: #{gae_forward.8} parent=0 // pred_check
    _
  $region23: #{gae_forward.8} parent=0 // pred_check_branch
    %279 = sbr.rel (0) target = $region25
  $region24: #{gae_forward.8} parent=0 // pred_region
    _
  $region25: #{gae_forward.8} parent=0 // pred_fallthru
    _
  // Predicated region
  $region26: #{gae_forward.8} parent=0 // pred_check
    _
  $region27: #{gae_forward.8} parent=0 // pred_check_branch
    %281 = sbr.rel (0) target = $region29
  $region28: #{gae_forward.8} parent=0 // pred_region
    _
  $region29: #{gae_forward.8} parent=0 // pred_fallthru
    _

// kernel: gae_forward.13
$region0: #{gae_forward.13}
  #allocation0 [shape = 'u32[]', space=smem, size = 0x4, offset = 0x4, fixed_abs, tag = 'smem constant byte address 0x4 - core index']
  #allocation1 [shape = 'u32[72,128]{1,0:T(1,128)}', space=vmem, size = 0x9000, scoped, tag = 'internal scratch']
  %s0 = inlined_call_operand.vmem [shape: f32[8,128], index: 0, kind: input, shape index: {}]
  %s1 = inlined_call_operand.vmem [shape: f32[8,128], index: 1, kind: input, shape index: {}]
  %s2 = inlined_call_operand.vmem [shape: f32[128,128], index: 2, kind: input, shape index: {}]
  %s3 = inlined_call_operand.vmem [shape: f32[128,128], index: 3, kind: input, shape index: {}]
  %s4 = inlined_call_operand.vmem [shape: f32[1,128], index: 4, kind: input, shape index: {}]
  %s5 = inlined_call_operand.vmem [shape: f32[128,128], index: 5, kind: input, shape index: {}]
  %s6 = inlined_call_operand.vmem [shape: f32[1,128], index: 6, kind: input, shape index: {}]
  %s7 = inlined_call_operand.vmem [shape: f32[8,128], index: 7, kind: output, shape index: {}]
  %s8 = sld [smem:[#allocation0]]
  $region38: #{gae_forward.13} parent=0
    _
  %s10 = ssub.s32 1, %s8
  %s11 = scalar_select 0, %s10, %s8
  // Predicated region
  $region2: #{gae_forward.13} parent=0 // pred_check
    _
  $region3: #{gae_forward.13} parent=0 // pred_check_branch
    %13 = sbr.rel (0) target = $region5
  $region4: #{gae_forward.13} parent=0 // pred_region
    _
  $region5: #{gae_forward.13} parent=0 // pred_fallthru
    _
  // Predicated region
  $region6: #{gae_forward.13} parent=0 // pred_check
    _
  $region7: #{gae_forward.13} parent=0 // pred_check_branch
    %15 = sbr.rel (0) target = $region9
  $region8: #{gae_forward.13} parent=0 // pred_region
    _
  $region9: #{gae_forward.13} parent=0 // pred_fallthru
    _
  // Predicated region
  $region10: #{gae_forward.13} parent=0 // pred_check
    _
  $region11: #{gae_forward.13} parent=0 // pred_check_branch
    %17 = sbr.rel (0) target = $region13
  $region12: #{gae_forward.13} parent=0 // pred_region
    _
  $region13: #{gae_forward.13} parent=0 // pred_fallthru
    _
  // Predicated region
  $region14: #{gae_forward.13} parent=0 // pred_check
    _
  $region15: #{gae_forward.13} parent=0 // pred_check_branch
    %19 = sbr.rel (0) target = $region17
  $region16: #{gae_forward.13} parent=0 // pred_region
    _
  $region17: #{gae_forward.13} parent=0 // pred_fallthru
    _
  // Predicated region
  $region18: #{gae_forward.13} parent=0 // pred_check
    _
  $region19: #{gae_forward.13} parent=0 // pred_check_branch
    %21 = sbr.rel (0) target = $region21
  $region20: #{gae_forward.13} parent=0 // pred_region
    _
  $region21: #{gae_forward.13} parent=0 // pred_fallthru
    _
  // Predicated region
  $region22: #{gae_forward.13} parent=0 // pred_check
    _
  $region23: #{gae_forward.13} parent=0 // pred_check_branch
    %23 = sbr.rel (0) target = $region25
  $region24: #{gae_forward.13} parent=0 // pred_region
    _
  $region25: #{gae_forward.13} parent=0 // pred_fallthru
    _
  // Predicated region
  $region26: #{gae_forward.13} parent=0 // pred_check
    _
  $region27: #{gae_forward.13} parent=0 // pred_check_branch
    %25 = sbr.rel (0) target = $region29
  $region28: #{gae_forward.13} parent=0 // pred_region
    _
  $region29: #{gae_forward.13} parent=0 // pred_fallthru
    _
  %v26 = vld [vmem:[%s0] sm:$0xff]
  %v27 = vld [vmem:[%s2] sm:$0xff]
  %v28 = vld [vmem:[%s2 + $0x8] sm:$0xff]
  %v29 = vld [vmem:[%s2 + $0x10] sm:$0xff]
  %v30 = vld [vmem:[%s2 + $0x18] sm:$0xff]
  %v31 = vld [vmem:[%s2 + $0x20] sm:$0xff]
  %v32 = vld [vmem:[%s2 + $0x28] sm:$0xff]
  %v33 = vld [vmem:[%s2 + $0x30] sm:$0xff]
  %v34 = vld [vmem:[%s2 + $0x38] sm:$0xff]
  %v35 = vld [vmem:[%s2 + $0x40] sm:$0xff]
  %v36 = vld [vmem:[%s2 + $0x48] sm:$0xff]
  %v37 = vld [vmem:[%s2 + $0x50] sm:$0xff]
  %v38 = vld [vmem:[%s2 + $0x58] sm:$0xff]
  %v39 = vld [vmem:[%s2 + $0x60] sm:$0xff]
  %v40 = vld [vmem:[%s2 + $0x68] sm:$0xff]
  %v41 = vld [vmem:[%s2 + $0x70] sm:$0xff]
  %v42 = vld [vmem:[%s2 + $0x78] sm:$0xff]
  %v43 = vld [vmem:[%s1] sm:$0xff]
  %v44 = vld [vmem:[%s3] sm:$0xff]
  %v45 = vld [vmem:[%s3 + $0x8] sm:$0xff]
  %v46 = vld [vmem:[%s3 + $0x10] sm:$0xff]
  %v47 = vld [vmem:[%s3 + $0x18] sm:$0xff]
  %v48 = vld [vmem:[%s3 + $0x20] sm:$0xff]
  %v49 = vld [vmem:[%s3 + $0x28] sm:$0xff]
  %v50 = vld [vmem:[%s3 + $0x30] sm:$0xff]
  %v51 = vld [vmem:[%s3 + $0x38] sm:$0xff]
  %v52 = vld [vmem:[%s3 + $0x40] sm:$0xff]
  %v53 = vld [vmem:[%s3 + $0x48] sm:$0xff]
  %v54 = vld [vmem:[%s3 + $0x50] sm:$0xff]
  %v55 = vld [vmem:[%s3 + $0x58] sm:$0xff]
  %v56 = vld [vmem:[%s3 + $0x60] sm:$0xff]
  %v57 = vld [vmem:[%s3 + $0x68] sm:$0xff]
  %v58 = vld [vmem:[%s3 + $0x70] sm:$0xff]
  %v59 = vld [vmem:[%s3 + $0x78] sm:$0xff]
  %60 = vmatpush.msra.mxu0 %v59
  %61 = vmatpush.msra.mxu0 %v58
  %62 = vmatpush.msra.mxu0 %v57
  %63 = vmatpush.msra.mxu0 %v56
  %64 = vmatpush.msra.mxu0 %v55
  %65 = vmatpush.msra.mxu0 %v54
  %66 = vmatpush.msra.mxu0 %v53
  %67 = vmatpush.msra.mxu0 %v52
  %68 = vmatpush.msra.mxu0 %v51
  %69 = vmatpush.msra.mxu0 %v50
  %70 = vmatpush.msra.mxu0 %v49
  %71 = vmatpush.msra.mxu0 %v48
  %72 = vmatpush.msra.mxu0 %v47
  %73 = vmatpush.msra.mxu0 %v46
  %74 = vmatpush.msra.mxu0 %v45
  %75 = vmatpush.msra.mxu0 %v44
  %76 = vmatmul.f32.gmra.mxu0 %v43
  %v77 = vpop.f32.mrf.mxu0
  %v78 = vadd.f32 0.0, %v77
  %79 = vdwg.mxu0
  %80 = vmatpush.msra.mxu0 %v42
  %81 = vmatpush.msra.mxu0 %v41
  %82 = vmatpush.msra.mxu0 %v40
  %83 = vmatpush.msra.mxu0 %v39
  %84 = vmatpush.msra.mxu0 %v38
  %85 = vmatpush.msra.mxu0 %v37
  %86 = vmatpush.msra.mxu0 %v36
  %87 = vmatpush.msra.mxu0 %v35
  %88 = vmatpush.msra.mxu0 %v34
  %89 = vmatpush.msra.mxu0 %v33
  %90 = vmatpush.msra.mxu0 %v32
  %91 = vmatpush.msra.mxu0 %v31
  %92 = vmatpush.msra.mxu0 %v30
  %93 = vmatpush.msra.mxu0 %v29
  %94 = vmatpush.msra.mxu0 %v28
  %95 = vmatpush.msra.mxu0 %v27
  %96 = vmatmul.f32.gmra.mxu0 %v26
  %v97 = vpop.f32.mrf.mxu0
  %v98 = vadd.f32 %v78, %v97
  %99 = vdwg.mxu0
  %v100 = vld [vmem:[%s4] sm:$0x1]
  %v102 = vperm.slane %v100, 0
  %v104 = vadd.f32 %v98, %v102
  %v105 = vmax.f32 %v104, 0.0
  %v106 = vld [vmem:[%s5] sm:$0xff]
  %v107 = vld [vmem:[%s5 + $0x8] sm:$0xff]
  %v108 = vld [vmem:[%s5 + $0x10] sm:$0xff]
  %v109 = vld [vmem:[%s5 + $0x18] sm:$0xff]
  %v110 = vld [vmem:[%s5 + $0x20] sm:$0xff]
  %v111 = vld [vmem:[%s5 + $0x28] sm:$0xff]
  %v112 = vld [vmem:[%s5 + $0x30] sm:$0xff]
  %v113 = vld [vmem:[%s5 + $0x38] sm:$0xff]
  %v114 = vld [vmem:[%s5 + $0x40] sm:$0xff]
  %v115 = vld [vmem:[%s5 + $0x48] sm:$0xff]
  %v116 = vld [vmem:[%s5 + $0x50] sm:$0xff]
  %v117 = vld [vmem:[%s5 + $0x58] sm:$0xff]
  %v118 = vld [vmem:[%s5 + $0x60] sm:$0xff]
  %v119 = vld [vmem:[%s5 + $0x68] sm:$0xff]
  %v120 = vld [vmem:[%s5 + $0x70] sm:$0xff]
  %v121 = vld [vmem:[%s5 + $0x78] sm:$0xff]
  %v122 = vld [vmem:[%s6] sm:$0x1]
  %v124 = vperm.slane %v122, 0
  %126 = vmatpush.msra.mxu0 %v121
  %127 = vmatpush.msra.mxu0 %v120
  %128 = vmatpush.msra.mxu0 %v119
  %129 = vmatpush.msra.mxu0 %v118
  %130 = vmatpush.msra.mxu0 %v117
  %131 = vmatpush.msra.mxu0 %v116
  %132 = vmatpush.msra.mxu0 %v115
  %133 = vmatpush.msra.mxu0 %v114
  %134 = vmatpush.msra.mxu0 %v113
  %135 = vmatpush.msra.mxu0 %v112
  %136 = vmatpush.msra.mxu0 %v111
  %137 = vmatpush.msra.mxu0 %v110
  %138 = vmatpush.msra.mxu0 %v109
  %139 = vmatpush.msra.mxu0 %v108
  %140 = vmatpush.msra.mxu0 %v107
  %141 = vmatpush.msra.mxu0 %v106
  %142 = vmatmul.f32.gmra.mxu0 %v105
  %v143 = vpop.f32.mrf.mxu0
  %v144 = vadd.f32 %v124, %v143
  %145 = vdwg.mxu0
  %v146 = vxor.u32 %v144, 2147483648
  %v147 = vmul.f32 %v146, 1.442695
  %v148 = vpow.pop %v147
  %v149 = vadd.f32 %v148, 1.0
  %v150 = vrcp.pop %v149
  %v151 = vmul.f32 %v149, %v150
  %v152 = vsub.f32 1.0, %v151
  %v153 = vmul.f32 %v150, %v152
  %v154 = vadd.f32 %v150, %v153
  %vm155 = vweird.f32 %v149
  %vm156 = vweird.f32 %v150
  %vm157 = vmor %vm155, %vm156
  %v158 = vsel %vm157, %v150, %v154
  %v159 = vand.u32 2147483647, %v149
  %vm160 = vcmp.eq.f32.partialorder %v159, 8.507059e+37
  %v161 = vand.u32 %v149, 2147483648
  %v162 = vor.u32 1.1754944e-38, %v161
  %v163 = vsel %vm160, %v162, %v158
  %v164 = vmul.f32 1.0, %v163
  %165 = vst [vmem:[%s7] sm:$0xff] %v164
  // Predicated region
  $region30: #{gae_forward.13} parent=0 // pred_check
    _
  $region31: #{gae_forward.13} parent=0 // pred_check_branch
    %167 = sbr.rel (0) target = $region33
  $region32: #{gae_forward.13} parent=0 // pred_region
    _
  $region33: #{gae_forward.13} parent=0 // pred_fallthru
    _
  // Predicated region
  $region34: #{gae_forward.13} parent=0 // pred_check
    _
  $region35: #{gae_forward.13} parent=0 // pred_check_branch
    %169 = sbr.rel (0) target = $region37
  $region36: #{gae_forward.13} parent=0 // pred_region
    _
  $region37: #{gae_forward.13} parent=0 // pred_fallthru
    _

</llo_original>
